<compile_context>
chip_gen: v7x
topology: tpu7x:2x2x1
jax: 0.10.0
libtpu: 0.0.40
codegen_flags: <defaults>
</compile_context>

<pallas_src>
import functools

import jax
import jax.numpy as jnp
from jax.experimental import pallas as pl
from jax.experimental.pallas import tpu as pltpu

# ----------------------------- model config -----------------------------
VOCAB_SIZE = 50
OUTPUT_SIZE = 1
EMBED_DIM = 32
HIDDEN_DIM = 32
N_LAYERS = 2
BATCH = 2
SEQ = 8


# ------------------------- in-kernel LSTM gate math -------------------------
def _lstm_gates(gates, c_prev, H):
    """gates: (R, 4H) packed in PyTorch order (i, f, g, o); c_prev: (R, H).
    Full-width sigmoid/tanh over the gates block (EUP slot is idle), then slice per gate."""
    sig = jax.nn.sigmoid(gates)
    th = jnp.tanh(gates)
    i_g = sig[:, 0 * H:1 * H]
    f_g = sig[:, 1 * H:2 * H]
    g_g = th[:, 2 * H:3 * H]
    o_g = sig[:, 3 * H:4 * H]
    c_new = f_g * c_prev + i_g * g_g
    h_new = o_g * jnp.tanh(c_new)
    return h_new, c_new


# ------------------------- fused forward kernel -------------------------
def _sentiment_fused_kernel(
        tok_ref,                      # SMEM (T*B,) int32 [scalar prefetch], time-major: t*B + b
        emb_proj_ref,                 # VMEM (V, 4H) f32 : embedding @ W_ih0^T + (b_ih0 + b_hh0)
        h0_ref, c0_ref,               # VMEM (L, B, H) f32
        whh0_ref,                     # VMEM (H, 4H) bf16
        wih1_ref, whh1_ref,           # VMEM (H, 4H) bf16
        b1_ref,                       # VMEM (1, 4H) f32
        fcw_ref, fcb_ref,             # VMEM (H, O) f32, (1, O) f32
        out_ref, hn_ref, cn_ref,      # VMEM (B, O), (L, B, H), (L, B, H)
        *, seq_len, batch, hidden):
    T, B, H = seq_len, batch, hidden

    # (1) Hoisted gather: layer-0 input projections for all T*B rows, off the serial h->h chain.
    xproj = jnp.concatenate(
        [emb_proj_ref[pl.ds(tok_ref[i], 1), :] for i in range(T * B)], axis=0)  # (T*B, 4H) f32

    whh0 = whh0_ref[...]          # bf16 MXU operands, f32 accumulation
    wih1 = wih1_ref[...]
    whh1 = whh1_ref[...]
    b1 = b1_ref[...]              # f32

    def mxu(a_f32, w_bf16):
        return jnp.dot(a_f32.astype(jnp.bfloat16), w_bf16,
                       preferred_element_type=jnp.float32)

    h0 = h0_ref[0]
    c0 = c0_ref[0]
    h1 = h0_ref[1]
    c1 = c0_ref[1]

    # (2) Wavefront: wave w = layer-0 step w  +  layer-1 step w-1 (independent MXU chains).
    for w in range(T + 1):
        run0 = w < T
        run1 = w > 0
        if run0:
            # layer-0 gates for step w (uses h0 = state after step w-1)
            g0 = xproj[w * B:(w + 1) * B, :] + mxu(h0, whh0)
        if run1:
            # layer-1 gates for step w-1 (input = layer-0 output at step w-1 = current h0)
            g1 = mxu(h0, wih1) + mxu(h1, whh1) + b1
        if run0 and run1:
            # one gate-math pass for both layers: (2B, 4H) gates, (2B, H) cell state
            h_new, c_new = _lstm_gates(jnp.concatenate([g0, g1], axis=0),
                                       jnp.concatenate([c0, c1], axis=0), H)
            h0, c0 = h_new[:B], c_new[:B]
            h1, c1 = h_new[B:], c_new[B:]
        elif run0:
            h0, c0 = _lstm_gates(g0, c0, H)
        else:
            h1, c1 = _lstm_gates(g1, c1, H)

    hn_ref[0] = h0
    cn_ref[0] = c0
    hn_ref[1] = h1
    cn_ref[1] = c1

    # fc + sigmoid only on the last timestep's top-layer hidden state (module discards the rest:
    # out.view(B, -1)[:, -1] with output_size=1 is exactly sigmoid(fc(h_top[T-1]))).
    logits = jnp.dot(h1, fcw_ref[...], preferred_element_type=jnp.float32) + fcb_ref[...]
    out_ref[...] = jax.nn.sigmoid(logits)


# ------------------------- wrapper -------------------------
@jax.jit
def sentiment_net_forward(prep, tokens, hidden):
    """tokens: (B, T) int32; hidden: (h0, c0) each (L, B, H).
    Returns (out (B,), (h_n, c_n))."""
    h0, c0 = hidden
    B, T = tokens.shape
    L, _, H = h0.shape
    G = 4 * H
    V = prep["emb_proj"].shape[0]
    O = prep["fc_w_t"].shape[-1]

    # time-major flat tokens: tok_flat[t*B + b]
    tok_flat = tokens.T.reshape(-1).astype(jnp.int32)

    kernel = functools.partial(_sentiment_fused_kernel, seq_len=T, batch=B, hidden=H)

    grid_spec = pltpu.PrefetchScalarGridSpec(
        num_scalar_prefetch=1,
        grid=(1,),
        in_specs=[
            pl.BlockSpec((V, G), lambda i, tok: (0, 0)),          # emb_proj (f32, dense 2-D)
            pl.BlockSpec((L, B, H), lambda i, tok: (0, 0, 0)),    # h0
            pl.BlockSpec((L, B, H), lambda i, tok: (0, 0, 0)),    # c0
            pl.BlockSpec((H, G), lambda i, tok: (0, 0)),          # W_hh0^T (bf16)
            pl.BlockSpec((H, G), lambda i, tok: (0, 0)),          # W_ih1^T (bf16)
            pl.BlockSpec((H, G), lambda i, tok: (0, 0)),          # W_hh1^T (bf16)
            pl.BlockSpec((1, G), lambda i, tok: (0, 0)),          # bias1 (f32)
            pl.BlockSpec((H, O), lambda i, tok: (0, 0)),          # fc W (f32)
            pl.BlockSpec((1, O), lambda i, tok: (0, 0)),          # fc b (f32)
        ],
        out_specs=[
            pl.BlockSpec((B, O), lambda i, tok: (0, 0)),          # sigmoid(fc(h_last))
            pl.BlockSpec((L, B, H), lambda i, tok: (0, 0, 0)),    # h_n
            pl.BlockSpec((L, B, H), lambda i, tok: (0, 0, 0)),    # c_n
        ],
    )

    out, h_n, c_n = pl.pallas_call(
        kernel,
        grid_spec=grid_spec,
        out_shape=(
            jax.ShapeDtypeStruct((B, O), jnp.float32),
            jax.ShapeDtypeStruct((L, B, H), jnp.float32),
            jax.ShapeDtypeStruct((L, B, H), jnp.float32),
        ),
        compiler_params=pltpu.CompilerParams(
            dimension_semantics=("arbitrary",)),   # single serial invocation
    )(tok_flat, prep["emb_proj"], h0, c0, prep["whh0_t"],
      prep["wih1_t"], prep["whh1_t"], prep["b1"], prep["fc_w_t"], prep["fc_b"])

    return out[:, 0], (h_n, c_n)


# ------------------------- parameter init (PyTorch layout) -------------------------
def init_params(key):
    ks = jax.random.split(key, 2 + N_LAYERS)
    bound = 1.0 / jnp.sqrt(HIDDEN_DIM)
    params = {"embedding": jax.random.normal(ks[0], (VOCAB_SIZE, EMBED_DIM), jnp.float32)}
    lstm = []
    for l in range(N_LAYERS):
        in_dim = EMBED_DIM if l == 0 else HIDDEN_DIM
        k1, k2, k3, k4 = jax.random.split(ks[1 + l], 4)
        lstm.append({
            "w_ih": jax.random.uniform(k1, (4 * HIDDEN_DIM, in_dim), jnp.float32, -bound, bound),
            "w_hh": jax.random.uniform(k2, (4 * HIDDEN_DIM, HIDDEN_DIM), jnp.float32, -bound, bound),
            "b_ih": jax.random.uniform(k3, (4 * HIDDEN_DIM,), jnp.float32, -bound, bound),
            "b_hh": jax.random.uniform(k4, (4 * HIDDEN_DIM,), jnp.float32, -bound, bound),
        })
    params["lstm"] = lstm
    kf1, kf2 = jax.random.split(ks[-1], 2)
    params["fc_w"] = jax.random.uniform(kf1, (OUTPUT_SIZE, HIDDEN_DIM), jnp.float32, -bound, bound)
    params["fc_b"] = jax.random.uniform(kf2, (OUTPUT_SIZE,), jnp.float32, -bound, bound)
    return params


# ------------------------- weight prep (once, outside the kernel) -------------------------
def prepare_params(raw):
    p0, p1 = raw["lstm"]
    # Fold embedding lookup + layer-0 input projection + layer-0 bias into one dense f32 table:
    # row v = embedding[v] @ W_ih0^T + (b_ih0 + b_hh0). Gate order stays PyTorch (i, f, g, o).
    b0 = (p0["b_ih"] + p0["b_hh"]).reshape(1, -1)                       # (1, 4H)
    emb_proj = raw["embedding"] @ p0["w_ih"].T + b0                     # (V, 4H) f32
    return {
        "emb_proj": emb_proj,                                           # f32: gather only, no MXU
        "whh0_t": p0["w_hh"].T.astype(jnp.bfloat16),                    # (H, 4H) bf16 MXU operand
        "wih1_t": p1["w_ih"].T.astype(jnp.bfloat16),                    # (H, 4H) bf16
        "whh1_t": p1["w_hh"].T.astype(jnp.bfloat16),                    # (H, 4H) bf16
        "b1": (p1["b_ih"] + p1["b_hh"]).reshape(1, -1),                 # (1, 4H) f32
        "fc_w_t": raw["fc_w"].T,                                        # (H, O) f32
        "fc_b": raw["fc_b"].reshape(1, -1),                             # (1, O) f32
    }


# ------------------------- pure-JAX reference (PyTorch semantics) -------------------------
def _reference_forward(raw, tokens, hidden, mxu_dtype=jnp.float32):
    """mxu_dtype controls the operand precision of the recurrent-path matmuls
    (h @ W_hh and the layer-1 input projection), mirroring the kernel's bf16 MXU feed;
    accumulation and all elementwise math stay f32 (as in the kernel)."""
    h0_all, c0_all = hidden
    B, T = tokens.shape
    H = HIDDEN_DIM
    x = jnp.take(raw["embedding"], tokens, axis=0)   # (B, T, E) f32

    def mm(a, b):
        return jnp.dot(a.astype(mxu_dtype), b.astype(mxu_dtype),
                       preferred_element_type=jnp.float32)

    hs, cs = [], []
    for l in range(N_LAYERS):
        p = raw["lstm"][l]
        w_ih_t = p["w_ih"].T
        w_hh_t = p["w_hh"].T
        b = (p["b_ih"] + p["b_hh"]).reshape(1, -1)

        def step(carry, x_t, w_ih_t=w_ih_t, w_hh_t=w_hh_t, b=b, layer=l):
            h, c = carry
            if layer == 0:
                xin = x_t @ w_ih_t          # f32: kernel folds this into the f32 gather table
            else:
                xin = mm(x_t, w_ih_t)       # kernel feeds x1 / W_ih1 to the MXU in mxu_dtype
            g = xin + mm(h, w_hh_t) + b
            i = jax.nn.sigmoid(g[:, :H])
            f = jax.nn.sigmoid(g[:, H:2 * H])
            gg = jnp.tanh(g[:, 2 * H:3 * H])
            o = jax.nn.sigmoid(g[:, 3 * H:])
            c = f * c + i * gg
            h = o * jnp.tanh(c)
            return (h, c), h

        (h_n, c_n), ys = jax.lax.scan(step, (h0_all[l], c0_all[l]),
                                      jnp.transpose(x, (1, 0, 2)))
        x = jnp.transpose(ys, (1, 0, 2))
        hs.append(h_n)
        cs.append(c_n)
    flat = x.reshape(-1, HIDDEN_DIM)
    out = jax.nn.sigmoid(flat @ raw["fc_w"].T + raw["fc_b"].reshape(1, -1))
    return out.reshape(B, -1)[:, -1], (jnp.stack(hs), jnp.stack(cs))


if __name__ == "__main__":
    key = jax.random.PRNGKey(0)
    k_param, k_tok = jax.random.split(key)

    raw_params = init_params(k_param)
    prep = prepare_params(raw_params)
    tokens = jax.random.randint(k_tok, (BATCH, SEQ), 0, VOCAB_SIZE, dtype=jnp.int32)

    # init_hidden: zeros of shape (n_layers, batch, hidden_dim)
    h0 = jnp.zeros((N_LAYERS, BATCH, HIDDEN_DIM), jnp.float32)
    c0 = jnp.zeros((N_LAYERS, BATCH, HIDDEN_DIM), jnp.float32)

    out, (h_n, c_n) = sentiment_net_forward(prep, tokens, (h0, c0))
    jax.block_until_ready((out, h_n, c_n))

    assert out.shape == (BATCH,)
    assert h_n.shape == (N_LAYERS, BATCH, HIDDEN_DIM)
    assert c_n.shape == (N_LAYERS, BATCH, HIDDEN_DIM)

    # (a) Structural check: reference with the SAME precision choices (bf16 MXU operands,
    #     f32 accumulation) -> kernel must match tightly.
    ref_out_s, (ref_h_s, ref_c_s) = _reference_forward(
        raw_params, tokens, (h0, c0), mxu_dtype=jnp.bfloat16)
    assert jnp.allclose(out, ref_out_s, atol=1e-3), "output mismatch vs matched-precision ref"
    assert jnp.allclose(h_n, ref_h_s, atol=1e-3), "h_n mismatch vs matched-precision ref"
    assert jnp.allclose(c_n, ref_c_s, atol=1e-3), "c_n mismatch vs matched-precision ref"

    # (b) End-to-end check vs full-f32 PyTorch semantics: the only gap is the bf16 MXU-operand
    #     quantization requested by the perf review (accumulation stays f32), which perturbs the
    #     16-step recurrence slightly; bounded well below 2e-2 here.
    ref_out_f, (ref_h_f, ref_c_f) = _reference_forward(
        raw_params, tokens, (h0, c0), mxu_dtype=jnp.float32)
    assert jnp.allclose(out, ref_out_f, atol=2e-2), "output mismatch vs f32 reference"
    assert jnp.allclose(h_n, ref_h_f, atol=2e-2), "h_n mismatch vs f32 reference"
    assert jnp.allclose(c_n, ref_c_f, atol=2e-2), "c_n mismatch vs f32 reference"

    print("KERNEL_OK")
</pallas_src>

<mosaic_0001>
module attributes {stable_mosaic.version = 11 : i64} {
  func.func @_sentiment_fused_kernel(%arg0: i32, %arg1: memref<16xi32, #tpu.memory_space<smem>>, %arg2: memref<50x128xf32, #tpu.memory_space<vmem>>, %arg3: memref<2x2x32xf32, #tpu.memory_space<vmem>>, %arg4: memref<2x2x32xf32, #tpu.memory_space<vmem>>, %arg5: memref<32x128xbf16, #tpu.memory_space<vmem>>, %arg6: memref<32x128xbf16, #tpu.memory_space<vmem>>, %arg7: memref<32x128xbf16, #tpu.memory_space<vmem>>, %arg8: memref<1x128xf32, #tpu.memory_space<vmem>>, %arg9: memref<32x1xf32, #tpu.memory_space<vmem>>, %arg10: memref<1x1xf32, #tpu.memory_space<vmem>>, %arg11: memref<2x1xf32, #tpu.memory_space<vmem>>, %arg12: memref<2x2x32xf32, #tpu.memory_space<vmem>>, %arg13: memref<2x2x32xf32, #tpu.memory_space<vmem>>) attributes {dimension_semantics = [#tpu.dimension_semantics<arbitrary>], iteration_bounds = array<i64: 1>, scalar_prefetch = 1 : i64, scratch_operands = 0 : i64, tpu.core_type = #tpu.core_type<tc>, window_params = [{pipeline_mode = #tpu.pipeline_mode<synchronous>, transform_indices = @transform_0, window_bounds = array<i64: 50, 128>}, {pipeline_mode = #tpu.pipeline_mode<synchronous>, transform_indices = @transform_1, window_bounds = array<i64: 2, 2, 32>}, {pipeline_mode = #tpu.pipeline_mode<synchronous>, transform_indices = @transform_2, window_bounds = array<i64: 2, 2, 32>}, {pipeline_mode = #tpu.pipeline_mode<synchronous>, transform_indices = @transform_3, window_bounds = array<i64: 32, 128>}, {pipeline_mode = #tpu.pipeline_mode<synchronous>, transform_indices = @transform_4, window_bounds = array<i64: 32, 128>}, {pipeline_mode = #tpu.pipeline_mode<synchronous>, transform_indices = @transform_5, window_bounds = array<i64: 32, 128>}, {pipeline_mode = #tpu.pipeline_mode<synchronous>, transform_indices = @transform_6, window_bounds = array<i64: 1, 128>}, {pipeline_mode = #tpu.pipeline_mode<synchronous>, transform_indices = @transform_7, window_bounds = array<i64: 32, 1>}, {pipeline_mode = #tpu.pipeline_mode<synchronous>, transform_indices = @transform_8, window_bounds = array<i64: 1, 1>}, {pipeline_mode = #tpu.pipeline_mode<synchronous>, transform_indices = @transform_9, window_bounds = array<i64: 2, 1>}, {pipeline_mode = #tpu.pipeline_mode<synchronous>, transform_indices = @transform_10, window_bounds = array<i64: 2, 2, 32>}, {pipeline_mode = #tpu.pipeline_mode<synchronous>, transform_indices = @transform_11, window_bounds = array<i64: 2, 2, 32>}]} {
    %c0 = arith.constant 0 : index
    %0 = memref.load %arg1[%c0] : memref<16xi32, #tpu.memory_space<smem>>
    %1 = arith.index_cast %0 : i32 to index
    %c0_0 = arith.constant 0 : index
    %2 = vector.load %arg2[%1, %c0_0] : memref<50x128xf32, #tpu.memory_space<vmem>>, vector<1x128xf32>
    %c1 = arith.constant 1 : index
    %3 = memref.load %arg1[%c1] : memref<16xi32, #tpu.memory_space<smem>>
    %4 = arith.index_cast %3 : i32 to index
    %c0_1 = arith.constant 0 : index
    %5 = vector.load %arg2[%4, %c0_1] : memref<50x128xf32, #tpu.memory_space<vmem>>, vector<1x128xf32>
    %c2 = arith.constant 2 : index
    %6 = memref.load %arg1[%c2] : memref<16xi32, #tpu.memory_space<smem>>
    %7 = arith.index_cast %6 : i32 to index
    %c0_2 = arith.constant 0 : index
    %8 = vector.load %arg2[%7, %c0_2] : memref<50x128xf32, #tpu.memory_space<vmem>>, vector<1x128xf32>
    %c3 = arith.constant 3 : index
    %9 = memref.load %arg1[%c3] : memref<16xi32, #tpu.memory_space<smem>>
    %10 = arith.index_cast %9 : i32 to index
    %c0_3 = arith.constant 0 : index
    %11 = vector.load %arg2[%10, %c0_3] : memref<50x128xf32, #tpu.memory_space<vmem>>, vector<1x128xf32>
    %c4 = arith.constant 4 : index
    %12 = memref.load %arg1[%c4] : memref<16xi32, #tpu.memory_space<smem>>
    %13 = arith.index_cast %12 : i32 to index
    %c0_4 = arith.constant 0 : index
    %14 = vector.load %arg2[%13, %c0_4] : memref<50x128xf32, #tpu.memory_space<vmem>>, vector<1x128xf32>
    %c5 = arith.constant 5 : index
    %15 = memref.load %arg1[%c5] : memref<16xi32, #tpu.memory_space<smem>>
    %16 = arith.index_cast %15 : i32 to index
    %c0_5 = arith.constant 0 : index
    %17 = vector.load %arg2[%16, %c0_5] : memref<50x128xf32, #tpu.memory_space<vmem>>, vector<1x128xf32>
    %c6 = arith.constant 6 : index
    %18 = memref.load %arg1[%c6] : memref<16xi32, #tpu.memory_space<smem>>
    %19 = arith.index_cast %18 : i32 to index
    %c0_6 = arith.constant 0 : index
    %20 = vector.load %arg2[%19, %c0_6] : memref<50x128xf32, #tpu.memory_space<vmem>>, vector<1x128xf32>
    %c7 = arith.constant 7 : index
    %21 = memref.load %arg1[%c7] : memref<16xi32, #tpu.memory_space<smem>>
    %22 = arith.index_cast %21 : i32 to index
    %c0_7 = arith.constant 0 : index
    %23 = vector.load %arg2[%22, %c0_7] : memref<50x128xf32, #tpu.memory_space<vmem>>, vector<1x128xf32>
    %c8 = arith.constant 8 : index
    %24 = memref.load %arg1[%c8] : memref<16xi32, #tpu.memory_space<smem>>
    %25 = arith.index_cast %24 : i32 to index
    %c0_8 = arith.constant 0 : index
    %26 = vector.load %arg2[%25, %c0_8] : memref<50x128xf32, #tpu.memory_space<vmem>>, vector<1x128xf32>
    %c9 = arith.constant 9 : index
    %27 = memref.load %arg1[%c9] : memref<16xi32, #tpu.memory_space<smem>>
    %28 = arith.index_cast %27 : i32 to index
    %c0_9 = arith.constant 0 : index
    %29 = vector.load %arg2[%28, %c0_9] : memref<50x128xf32, #tpu.memory_space<vmem>>, vector<1x128xf32>
    %c10 = arith.constant 10 : index
    %30 = memref.load %arg1[%c10] : memref<16xi32, #tpu.memory_space<smem>>
    %31 = arith.index_cast %30 : i32 to index
    %c0_10 = arith.constant 0 : index
    %32 = vector.load %arg2[%31, %c0_10] : memref<50x128xf32, #tpu.memory_space<vmem>>, vector<1x128xf32>
    %c11 = arith.constant 11 : index
    %33 = memref.load %arg1[%c11] : memref<16xi32, #tpu.memory_space<smem>>
    %34 = arith.index_cast %33 : i32 to index
    %c0_11 = arith.constant 0 : index
    %35 = vector.load %arg2[%34, %c0_11] : memref<50x128xf32, #tpu.memory_space<vmem>>, vector<1x128xf32>
    %c12 = arith.constant 12 : index
    %36 = memref.load %arg1[%c12] : memref<16xi32, #tpu.memory_space<smem>>
    %37 = arith.index_cast %36 : i32 to index
    %c0_12 = arith.constant 0 : index
    %38 = vector.load %arg2[%37, %c0_12] : memref<50x128xf32, #tpu.memory_space<vmem>>, vector<1x128xf32>
    %c13 = arith.constant 13 : index
    %39 = memref.load %arg1[%c13] : memref<16xi32, #tpu.memory_space<smem>>
    %40 = arith.index_cast %39 : i32 to index
    %c0_13 = arith.constant 0 : index
    %41 = vector.load %arg2[%40, %c0_13] : memref<50x128xf32, #tpu.memory_space<vmem>>, vector<1x128xf32>
    %c14 = arith.constant 14 : index
    %42 = memref.load %arg1[%c14] : memref<16xi32, #tpu.memory_space<smem>>
    %43 = arith.index_cast %42 : i32 to index
    %c0_14 = arith.constant 0 : index
    %44 = vector.load %arg2[%43, %c0_14] : memref<50x128xf32, #tpu.memory_space<vmem>>, vector<1x128xf32>
    %c15 = arith.constant 15 : index
    %45 = memref.load %arg1[%c15] : memref<16xi32, #tpu.memory_space<smem>>
    %46 = arith.index_cast %45 : i32 to index
    %c0_15 = arith.constant 0 : index
    %47 = vector.load %arg2[%46, %c0_15] : memref<50x128xf32, #tpu.memory_space<vmem>>, vector<1x128xf32>
    %48 = tpu.concatenate %2, %5, %8, %11, %14, %17, %20, %23, %26, %29, %32, %35, %38, %41, %44, %47 in 0 : vector<1x128xf32>, vector<1x128xf32>, vector<1x128xf32>, vector<1x128xf32>, vector<1x128xf32>, vector<1x128xf32>, vector<1x128xf32>, vector<1x128xf32>, vector<1x128xf32>, vector<1x128xf32>, vector<1x128xf32>, vector<1x128xf32>, vector<1x128xf32>, vector<1x128xf32>, vector<1x128xf32>, vector<1x128xf32> -> vector<16x128xf32>
    %c0_16 = arith.constant 0 : index
    %c0_17 = arith.constant 0 : index
    %49 = vector.load %arg5[%c0_16, %c0_17] : memref<32x128xbf16, #tpu.memory_space<vmem>>, vector<32x128xbf16>
    %c0_18 = arith.constant 0 : index
    %c0_19 = arith.constant 0 : index
    %50 = vector.load %arg6[%c0_18, %c0_19] : memref<32x128xbf16, #tpu.memory_space<vmem>>, vector<32x128xbf16>
    %c0_20 = arith.constant 0 : index
    %c0_21 = arith.constant 0 : index
    %51 = vector.load %arg7[%c0_20, %c0_21] : memref<32x128xbf16, #tpu.memory_space<vmem>>, vector<32x128xbf16>
    %c0_22 = arith.constant 0 : index
    %c0_23 = arith.constant 0 : index
    %52 = vector.load %arg8[%c0_22, %c0_23] : memref<1x128xf32, #tpu.memory_space<vmem>>, vector<1x128xf32>
    %c0_24 = arith.constant 0 : index
    %c0_25 = arith.constant 0 : index
    %c0_26 = arith.constant 0 : index
    %53 = vector.load %arg3[%c0_24, %c0_25, %c0_26] : memref<2x2x32xf32, #tpu.memory_space<vmem>>, vector<1x2x32xf32>
    %54 = vector.shape_cast %53 : vector<1x2x32xf32> to vector<2x32xf32>
    %c0_27 = arith.constant 0 : index
    %c0_28 = arith.constant 0 : index
    %c0_29 = arith.constant 0 : index
    %55 = vector.load %arg4[%c0_27, %c0_28, %c0_29] : memref<2x2x32xf32, #tpu.memory_space<vmem>>, vector<1x2x32xf32>
    %56 = vector.shape_cast %55 : vector<1x2x32xf32> to vector<2x32xf32>
    %c1_30 = arith.constant 1 : index
    %c0_31 = arith.constant 0 : index
    %c0_32 = arith.constant 0 : index
    %57 = vector.load %arg3[%c1_30, %c0_31, %c0_32] : memref<2x2x32xf32, #tpu.memory_space<vmem>>, vector<1x2x32xf32>
    %58 = vector.shape_cast %57 : vector<1x2x32xf32> to vector<2x32xf32>
    %c1_33 = arith.constant 1 : index
    %c0_34 = arith.constant 0 : index
    %c0_35 = arith.constant 0 : index
    %59 = vector.load %arg4[%c1_33, %c0_34, %c0_35] : memref<2x2x32xf32, #tpu.memory_space<vmem>>, vector<1x2x32xf32>
    %60 = vector.shape_cast %59 : vector<1x2x32xf32> to vector<2x32xf32>
    %61 = vector.extract_strided_slice %48 {offsets = [0, 0], sizes = [2, 128], strides = [1, 1]} : vector<16x128xf32> to vector<2x128xf32>
    %62 = arith.truncf %54 : vector<2x32xf32> to vector<2x32xbf16>
    %cst = arith.constant dense<0.000000e+00> : vector<2x128xf32>
    %63 = tpu.matmul %62, %49, %cst {dimension_numbers = #tpu.dot_dimension_numbers<[1], [0], [0], [1], [0, 0, 1, 1], [], []>} : vector<2x32xbf16>, vector<32x128xbf16>, vector<2x128xf32> -> vector<2x128xf32>
    %64 = arith.addf %61, %63 : vector<2x128xf32>
    %65 = arith.negf %64 : vector<2x128xf32>
    %66 = math.exp %65 : vector<2x128xf32>
    %cst_36 = arith.constant 1.000000e+00 : f32
    %67 = vector.broadcast %cst_36 : f32 to vector<2x128xf32>
    %68 = arith.addf %67, %66 : vector<2x128xf32>
    %69 = arith.divf %67, %68 : vector<2x128xf32>
    %70 = math.tanh %64 : vector<2x128xf32>
    %71 = vector.extract_strided_slice %69 {offsets = [0, 0], sizes = [2, 32], strides = [1, 1]} : vector<2x128xf32> to vector<2x32xf32>
    %72 = vector.extract_strided_slice %69 {offsets = [0, 32], sizes = [2, 32], strides = [1, 1]} : vector<2x128xf32> to vector<2x32xf32>
    %73 = vector.extract_strided_slice %70 {offsets = [0, 64], sizes = [2, 32], strides = [1, 1]} : vector<2x128xf32> to vector<2x32xf32>
    %74 = vector.extract_strided_slice %69 {offsets = [0, 96], sizes = [2, 32], strides = [1, 1]} : vector<2x128xf32> to vector<2x32xf32>
    %75 = arith.mulf %72, %56 : vector<2x32xf32>
    %76 = arith.mulf %71, %73 : vector<2x32xf32>
    %77 = arith.addf %75, %76 : vector<2x32xf32>
    %78 = math.tanh %77 : vector<2x32xf32>
    %79 = arith.mulf %74, %78 : vector<2x32xf32>
    %80 = vector.extract_strided_slice %48 {offsets = [2, 0], sizes = [2, 128], strides = [1, 1]} : vector<16x128xf32> to vector<2x128xf32>
    %81 = arith.truncf %79 : vector<2x32xf32> to vector<2x32xbf16>
    %cst_37 = arith.constant dense<0.000000e+00> : vector<2x128xf32>
    %82 = tpu.matmul %81, %49, %cst_37 {dimension_numbers = #tpu.dot_dimension_numbers<[1], [0], [0], [1], [0, 0, 1, 1], [], []>} : vector<2x32xbf16>, vector<32x128xbf16>, vector<2x128xf32> -> vector<2x128xf32>
    %83 = arith.addf %80, %82 : vector<2x128xf32>
    %84 = arith.truncf %79 : vector<2x32xf32> to vector<2x32xbf16>
    %cst_38 = arith.constant dense<0.000000e+00> : vector<2x128xf32>
    %85 = tpu.matmul %84, %50, %cst_38 {dimension_numbers = #tpu.dot_dimension_numbers<[1], [0], [0], [1], [0, 0, 1, 1], [], []>} : vector<2x32xbf16>, vector<32x128xbf16>, vector<2x128xf32> -> vector<2x128xf32>
    %86 = arith.truncf %58 : vector<2x32xf32> to vector<2x32xbf16>
    %cst_39 = arith.constant dense<0.000000e+00> : vector<2x128xf32>
    %87 = tpu.matmul %86, %51, %cst_39 {dimension_numbers = #tpu.dot_dimension_numbers<[1], [0], [0], [1], [0, 0, 1, 1], [], []>} : vector<2x32xbf16>, vector<32x128xbf16>, vector<2x128xf32> -> vector<2x128xf32>
    %88 = arith.addf %85, %87 : vector<2x128xf32>
    %89 = vector.broadcast %52 : vector<1x128xf32> to vector<2x128xf32>
    %90 = arith.addf %88, %89 : vector<2x128xf32>
    %91 = tpu.concatenate %83, %90 in 0 : vector<2x128xf32>, vector<2x128xf32> -> vector<4x128xf32>
    %92 = tpu.concatenate %77, %60 in 0 : vector<2x32xf32>, vector<2x32xf32> -> vector<4x32xf32>
    %93 = arith.negf %91 : vector<4x128xf32>
    %94 = math.exp %93 : vector<4x128xf32>
    %cst_40 = arith.constant 1.000000e+00 : f32
    %95 = vector.broadcast %cst_40 : f32 to vector<4x128xf32>
    %96 = arith.addf %95, %94 : vector<4x128xf32>
    %97 = arith.divf %95, %96 : vector<4x128xf32>
    %98 = math.tanh %91 : vector<4x128xf32>
    %99 = vector.extract_strided_slice %97 {offsets = [0, 0], sizes = [4, 32], strides = [1, 1]} : vector<4x128xf32> to vector<4x32xf32>
    %100 = vector.extract_strided_slice %97 {offsets = [0, 32], sizes = [4, 32], strides = [1, 1]} : vector<4x128xf32> to vector<4x32xf32>
    %101 = vector.extract_strided_slice %98 {offsets = [0, 64], sizes = [4, 32], strides = [1, 1]} : vector<4x128xf32> to vector<4x32xf32>
    %102 = vector.extract_strided_slice %97 {offsets = [0, 96], sizes = [4, 32], strides = [1, 1]} : vector<4x128xf32> to vector<4x32xf32>
    %103 = arith.mulf %100, %92 : vector<4x32xf32>
    %104 = arith.mulf %99, %101 : vector<4x32xf32>
    %105 = arith.addf %103, %104 : vector<4x32xf32>
    %106 = math.tanh %105 : vector<4x32xf32>
    %107 = arith.mulf %102, %106 : vector<4x32xf32>
    %108 = vector.extract_strided_slice %107 {offsets = [0, 0], sizes = [2, 32], strides = [1, 1]} : vector<4x32xf32> to vector<2x32xf32>
    %109 = vector.extract_strided_slice %105 {offsets = [0, 0], sizes = [2, 32], strides = [1, 1]} : vector<4x32xf32> to vector<2x32xf32>
    %110 = vector.extract_strided_slice %107 {offsets = [2, 0], sizes = [2, 32], strides = [1, 1]} : vector<4x32xf32> to vector<2x32xf32>
    %111 = vector.extract_strided_slice %105 {offsets = [2, 0], sizes = [2, 32], strides = [1, 1]} : vector<4x32xf32> to vector<2x32xf32>
    %112 = vector.extract_strided_slice %48 {offsets = [4, 0], sizes = [2, 128], strides = [1, 1]} : vector<16x128xf32> to vector<2x128xf32>
    %113 = arith.truncf %108 : vector<2x32xf32> to vector<2x32xbf16>
    %cst_41 = arith.constant dense<0.000000e+00> : vector<2x128xf32>
    %114 = tpu.matmul %113, %49, %cst_41 {dimension_numbers = #tpu.dot_dimension_numbers<[1], [0], [0], [1], [0, 0, 1, 1], [], []>} : vector<2x32xbf16>, vector<32x128xbf16>, vector<2x128xf32> -> vector<2x128xf32>
    %115 = arith.addf %112, %114 : vector<2x128xf32>
    %116 = arith.truncf %108 : vector<2x32xf32> to vector<2x32xbf16>
    %cst_42 = arith.constant dense<0.000000e+00> : vector<2x128xf32>
    %117 = tpu.matmul %116, %50, %cst_42 {dimension_numbers = #tpu.dot_dimension_numbers<[1], [0], [0], [1], [0, 0, 1, 1], [], []>} : vector<2x32xbf16>, vector<32x128xbf16>, vector<2x128xf32> -> vector<2x128xf32>
    %118 = arith.truncf %110 : vector<2x32xf32> to vector<2x32xbf16>
    %cst_43 = arith.constant dense<0.000000e+00> : vector<2x128xf32>
    %119 = tpu.matmul %118, %51, %cst_43 {dimension_numbers = #tpu.dot_dimension_numbers<[1], [0], [0], [1], [0, 0, 1, 1], [], []>} : vector<2x32xbf16>, vector<32x128xbf16>, vector<2x128xf32> -> vector<2x128xf32>
    %120 = arith.addf %117, %119 : vector<2x128xf32>
    %121 = vector.broadcast %52 : vector<1x128xf32> to vector<2x128xf32>
    %122 = arith.addf %120, %121 : vector<2x128xf32>
    %123 = tpu.concatenate %115, %122 in 0 : vector<2x128xf32>, vector<2x128xf32> -> vector<4x128xf32>
    %124 = tpu.concatenate %109, %111 in 0 : vector<2x32xf32>, vector<2x32xf32> -> vector<4x32xf32>
    %125 = arith.negf %123 : vector<4x128xf32>
    %126 = math.exp %125 : vector<4x128xf32>
    %cst_44 = arith.constant 1.000000e+00 : f32
    %127 = vector.broadcast %cst_44 : f32 to vector<4x128xf32>
    %128 = arith.addf %127, %126 : vector<4x128xf32>
    %129 = arith.divf %127, %128 : vector<4x128xf32>
    %130 = math.tanh %123 : vector<4x128xf32>
    %131 = vector.extract_strided_slice %129 {offsets = [0, 0], sizes = [4, 32], strides = [1, 1]} : vector<4x128xf32> to vector<4x32xf32>
    %132 = vector.extract_strided_slice %129 {offsets = [0, 32], sizes = [4, 32], strides = [1, 1]} : vector<4x128xf32> to vector<4x32xf32>
    %133 = vector.extract_strided_slice %130 {offsets = [0, 64], sizes = [4, 32], strides = [1, 1]} : vector<4x128xf32> to vector<4x32xf32>
    %134 = vector.extract_strided_slice %129 {offsets = [0, 96], sizes = [4, 32], strides = [1, 1]} : vector<4x128xf32> to vector<4x32xf32>
    %135 = arith.mulf %132, %124 : vector<4x32xf32>
    %136 = arith.mulf %131, %133 : vector<4x32xf32>
    %137 = arith.addf %135, %136 : vector<4x32xf32>
    %138 = math.tanh %137 : vector<4x32xf32>
    %139 = arith.mulf %134, %138 : vector<4x32xf32>
    %140 = vector.extract_strided_slice %139 {offsets = [0, 0], sizes = [2, 32], strides = [1, 1]} : vector<4x32xf32> to vector<2x32xf32>
    %141 = vector.extract_strided_slice %137 {offsets = [0, 0], sizes = [2, 32], strides = [1, 1]} : vector<4x32xf32> to vector<2x32xf32>
    %142 = vector.extract_strided_slice %139 {offsets = [2, 0], sizes = [2, 32], strides = [1, 1]} : vector<4x32xf32> to vector<2x32xf32>
    %143 = vector.extract_strided_slice %137 {offsets = [2, 0], sizes = [2, 32], strides = [1, 1]} : vector<4x32xf32> to vector<2x32xf32>
    %144 = vector.extract_strided_slice %48 {offsets = [6, 0], sizes = [2, 128], strides = [1, 1]} : vector<16x128xf32> to vector<2x128xf32>
    %145 = arith.truncf %140 : vector<2x32xf32> to vector<2x32xbf16>
    %cst_45 = arith.constant dense<0.000000e+00> : vector<2x128xf32>
    %146 = tpu.matmul %145, %49, %cst_45 {dimension_numbers = #tpu.dot_dimension_numbers<[1], [0], [0], [1], [0, 0, 1, 1], [], []>} : vector<2x32xbf16>, vector<32x128xbf16>, vector<2x128xf32> -> vector<2x128xf32>
    %147 = arith.addf %144, %146 : vector<2x128xf32>
    %148 = arith.truncf %140 : vector<2x32xf32> to vector<2x32xbf16>
    %cst_46 = arith.constant dense<0.000000e+00> : vector<2x128xf32>
    %149 = tpu.matmul %148, %50, %cst_46 {dimension_numbers = #tpu.dot_dimension_numbers<[1], [0], [0], [1], [0, 0, 1, 1], [], []>} : vector<2x32xbf16>, vector<32x128xbf16>, vector<2x128xf32> -> vector<2x128xf32>
    %150 = arith.truncf %142 : vector<2x32xf32> to vector<2x32xbf16>
    %cst_47 = arith.constant dense<0.000000e+00> : vector<2x128xf32>
    %151 = tpu.matmul %150, %51, %cst_47 {dimension_numbers = #tpu.dot_dimension_numbers<[1], [0], [0], [1], [0, 0, 1, 1], [], []>} : vector<2x32xbf16>, vector<32x128xbf16>, vector<2x128xf32> -> vector<2x128xf32>
    %152 = arith.addf %149, %151 : vector<2x128xf32>
    %153 = vector.broadcast %52 : vector<1x128xf32> to vector<2x128xf32>
    %154 = arith.addf %152, %153 : vector<2x128xf32>
    %155 = tpu.concatenate %147, %154 in 0 : vector<2x128xf32>, vector<2x128xf32> -> vector<4x128xf32>
    %156 = tpu.concatenate %141, %143 in 0 : vector<2x32xf32>, vector<2x32xf32> -> vector<4x32xf32>
    %157 = arith.negf %155 : vector<4x128xf32>
    %158 = math.exp %157 : vector<4x128xf32>
    %cst_48 = arith.constant 1.000000e+00 : f32
    %159 = vector.broadcast %cst_48 : f32 to vector<4x128xf32>
    %160 = arith.addf %159, %158 : vector<4x128xf32>
    %161 = arith.divf %159, %160 : vector<4x128xf32>
    %162 = math.tanh %155 : vector<4x128xf32>
    %163 = vector.extract_strided_slice %161 {offsets = [0, 0], sizes = [4, 32], strides = [1, 1]} : vector<4x128xf32> to vector<4x32xf32>
    %164 = vector.extract_strided_slice %161 {offsets = [0, 32], sizes = [4, 32], strides = [1, 1]} : vector<4x128xf32> to vector<4x32xf32>
    %165 = vector.extract_strided_slice %162 {offsets = [0, 64], sizes = [4, 32], strides = [1, 1]} : vector<4x128xf32> to vector<4x32xf32>
    %166 = vector.extract_strided_slice %161 {offsets = [0, 96], sizes = [4, 32], strides = [1, 1]} : vector<4x128xf32> to vector<4x32xf32>
    %167 = arith.mulf %164, %156 : vector<4x32xf32>
    %168 = arith.mulf %163, %165 : vector<4x32xf32>
    %169 = arith.addf %167, %168 : vector<4x32xf32>
    %170 = math.tanh %169 : vector<4x32xf32>
    %171 = arith.mulf %166, %170 : vector<4x32xf32>
    %172 = vector.extract_strided_slice %171 {offsets = [0, 0], sizes = [2, 32], strides = [1, 1]} : vector<4x32xf32> to vector<2x32xf32>
    %173 = vector.extract_strided_slice %169 {offsets = [0, 0], sizes = [2, 32], strides = [1, 1]} : vector<4x32xf32> to vector<2x32xf32>
    %174 = vector.extract_strided_slice %171 {offsets = [2, 0], sizes = [2, 32], strides = [1, 1]} : vector<4x32xf32> to vector<2x32xf32>
    %175 = vector.extract_strided_slice %169 {offsets = [2, 0], sizes = [2, 32], strides = [1, 1]} : vector<4x32xf32> to vector<2x32xf32>
    %176 = vector.extract_strided_slice %48 {offsets = [8, 0], sizes = [2, 128], strides = [1, 1]} : vector<16x128xf32> to vector<2x128xf32>
    %177 = arith.truncf %172 : vector<2x32xf32> to vector<2x32xbf16>
    %cst_49 = arith.constant dense<0.000000e+00> : vector<2x128xf32>
    %178 = tpu.matmul %177, %49, %cst_49 {dimension_numbers = #tpu.dot_dimension_numbers<[1], [0], [0], [1], [0, 0, 1, 1], [], []>} : vector<2x32xbf16>, vector<32x128xbf16>, vector<2x128xf32> -> vector<2x128xf32>
    %179 = arith.addf %176, %178 : vector<2x128xf32>
    %180 = arith.truncf %172 : vector<2x32xf32> to vector<2x32xbf16>
    %cst_50 = arith.constant dense<0.000000e+00> : vector<2x128xf32>
    %181 = tpu.matmul %180, %50, %cst_50 {dimension_numbers = #tpu.dot_dimension_numbers<[1], [0], [0], [1], [0, 0, 1, 1], [], []>} : vector<2x32xbf16>, vector<32x128xbf16>, vector<2x128xf32> -> vector<2x128xf32>
    %182 = arith.truncf %174 : vector<2x32xf32> to vector<2x32xbf16>
    %cst_51 = arith.constant dense<0.000000e+00> : vector<2x128xf32>
    %183 = tpu.matmul %182, %51, %cst_51 {dimension_numbers = #tpu.dot_dimension_numbers<[1], [0], [0], [1], [0, 0, 1, 1], [], []>} : vector<2x32xbf16>, vector<32x128xbf16>, vector<2x128xf32> -> vector<2x128xf32>
    %184 = arith.addf %181, %183 : vector<2x128xf32>
    %185 = vector.broadcast %52 : vector<1x128xf32> to vector<2x128xf32>
    %186 = arith.addf %184, %185 : vector<2x128xf32>
    %187 = tpu.concatenate %179, %186 in 0 : vector<2x128xf32>, vector<2x128xf32> -> vector<4x128xf32>
    %188 = tpu.concatenate %173, %175 in 0 : vector<2x32xf32>, vector<2x32xf32> -> vector<4x32xf32>
    %189 = arith.negf %187 : vector<4x128xf32>
    %190 = math.exp %189 : vector<4x128xf32>
    %cst_52 = arith.constant 1.000000e+00 : f32
    %191 = vector.broadcast %cst_52 : f32 to vector<4x128xf32>
    %192 = arith.addf %191, %190 : vector<4x128xf32>
    %193 = arith.divf %191, %192 : vector<4x128xf32>
    %194 = math.tanh %187 : vector<4x128xf32>
    %195 = vector.extract_strided_slice %193 {offsets = [0, 0], sizes = [4, 32], strides = [1, 1]} : vector<4x128xf32> to vector<4x32xf32>
    %196 = vector.extract_strided_slice %193 {offsets = [0, 32], sizes = [4, 32], strides = [1, 1]} : vector<4x128xf32> to vector<4x32xf32>
    %197 = vector.extract_strided_slice %194 {offsets = [0, 64], sizes = [4, 32], strides = [1, 1]} : vector<4x128xf32> to vector<4x32xf32>
    %198 = vector.extract_strided_slice %193 {offsets = [0, 96], sizes = [4, 32], strides = [1, 1]} : vector<4x128xf32> to vector<4x32xf32>
    %199 = arith.mulf %196, %188 : vector<4x32xf32>
    %200 = arith.mulf %195, %197 : vector<4x32xf32>
    %201 = arith.addf %199, %200 : vector<4x32xf32>
    %202 = math.tanh %201 : vector<4x32xf32>
    %203 = arith.mulf %198, %202 : vector<4x32xf32>
    %204 = vector.extract_strided_slice %203 {offsets = [0, 0], sizes = [2, 32], strides = [1, 1]} : vector<4x32xf32> to vector<2x32xf32>
    %205 = vector.extract_strided_slice %201 {offsets = [0, 0], sizes = [2, 32], strides = [1, 1]} : vector<4x32xf32> to vector<2x32xf32>
    %206 = vector.extract_strided_slice %203 {offsets = [2, 0], sizes = [2, 32], strides = [1, 1]} : vector<4x32xf32> to vector<2x32xf32>
    %207 = vector.extract_strided_slice %201 {offsets = [2, 0], sizes = [2, 32], strides = [1, 1]} : vector<4x32xf32> to vector<2x32xf32>
    %208 = vector.extract_strided_slice %48 {offsets = [10, 0], sizes = [2, 128], strides = [1, 1]} : vector<16x128xf32> to vector<2x128xf32>
    %209 = arith.truncf %204 : vector<2x32xf32> to vector<2x32xbf16>
    %cst_53 = arith.constant dense<0.000000e+00> : vector<2x128xf32>
    %210 = tpu.matmul %209, %49, %cst_53 {dimension_numbers = #tpu.dot_dimension_numbers<[1], [0], [0], [1], [0, 0, 1, 1], [], []>} : vector<2x32xbf16>, vector<32x128xbf16>, vector<2x128xf32> -> vector<2x128xf32>
    %211 = arith.addf %208, %210 : vector<2x128xf32>
    %212 = arith.truncf %204 : vector<2x32xf32> to vector<2x32xbf16>
    %cst_54 = arith.constant dense<0.000000e+00> : vector<2x128xf32>
    %213 = tpu.matmul %212, %50, %cst_54 {dimension_numbers = #tpu.dot_dimension_numbers<[1], [0], [0], [1], [0, 0, 1, 1], [], []>} : vector<2x32xbf16>, vector<32x128xbf16>, vector<2x128xf32> -> vector<2x128xf32>
    %214 = arith.truncf %206 : vector<2x32xf32> to vector<2x32xbf16>
    %cst_55 = arith.constant dense<0.000000e+00> : vector<2x128xf32>
    %215 = tpu.matmul %214, %51, %cst_55 {dimension_numbers = #tpu.dot_dimension_numbers<[1], [0], [0], [1], [0, 0, 1, 1], [], []>} : vector<2x32xbf16>, vector<32x128xbf16>, vector<2x128xf32> -> vector<2x128xf32>
    %216 = arith.addf %213, %215 : vector<2x128xf32>
    %217 = vector.broadcast %52 : vector<1x128xf32> to vector<2x128xf32>
    %218 = arith.addf %216, %217 : vector<2x128xf32>
    %219 = tpu.concatenate %211, %218 in 0 : vector<2x128xf32>, vector<2x128xf32> -> vector<4x128xf32>
    %220 = tpu.concatenate %205, %207 in 0 : vector<2x32xf32>, vector<2x32xf32> -> vector<4x32xf32>
    %221 = arith.negf %219 : vector<4x128xf32>
    %222 = math.exp %221 : vector<4x128xf32>
    %cst_56 = arith.constant 1.000000e+00 : f32
    %223 = vector.broadcast %cst_56 : f32 to vector<4x128xf32>
    %224 = arith.addf %223, %222 : vector<4x128xf32>
    %225 = arith.divf %223, %224 : vector<4x128xf32>
    %226 = math.tanh %219 : vector<4x128xf32>
    %227 = vector.extract_strided_slice %225 {offsets = [0, 0], sizes = [4, 32], strides = [1, 1]} : vector<4x128xf32> to vector<4x32xf32>
    %228 = vector.extract_strided_slice %225 {offsets = [0, 32], sizes = [4, 32], strides = [1, 1]} : vector<4x128xf32> to vector<4x32xf32>
    %229 = vector.extract_strided_slice %226 {offsets = [0, 64], sizes = [4, 32], strides = [1, 1]} : vector<4x128xf32> to vector<4x32xf32>
    %230 = vector.extract_strided_slice %225 {offsets = [0, 96], sizes = [4, 32], strides = [1, 1]} : vector<4x128xf32> to vector<4x32xf32>
    %231 = arith.mulf %228, %220 : vector<4x32xf32>
    %232 = arith.mulf %227, %229 : vector<4x32xf32>
    %233 = arith.addf %231, %232 : vector<4x32xf32>
    %234 = math.tanh %233 : vector<4x32xf32>
    %235 = arith.mulf %230, %234 : vector<4x32xf32>
    %236 = vector.extract_strided_slice %235 {offsets = [0, 0], sizes = [2, 32], strides = [1, 1]} : vector<4x32xf32> to vector<2x32xf32>
    %237 = vector.extract_strided_slice %233 {offsets = [0, 0], sizes = [2, 32], strides = [1, 1]} : vector<4x32xf32> to vector<2x32xf32>
    %238 = vector.extract_strided_slice %235 {offsets = [2, 0], sizes = [2, 32], strides = [1, 1]} : vector<4x32xf32> to vector<2x32xf32>
    %239 = vector.extract_strided_slice %233 {offsets = [2, 0], sizes = [2, 32], strides = [1, 1]} : vector<4x32xf32> to vector<2x32xf32>
    %240 = vector.extract_strided_slice %48 {offsets = [12, 0], sizes = [2, 128], strides = [1, 1]} : vector<16x128xf32> to vector<2x128xf32>
    %241 = arith.truncf %236 : vector<2x32xf32> to vector<2x32xbf16>
    %cst_57 = arith.constant dense<0.000000e+00> : vector<2x128xf32>
    %242 = tpu.matmul %241, %49, %cst_57 {dimension_numbers = #tpu.dot_dimension_numbers<[1], [0], [0], [1], [0, 0, 1, 1], [], []>} : vector<2x32xbf16>, vector<32x128xbf16>, vector<2x128xf32> -> vector<2x128xf32>
    %243 = arith.addf %240, %242 : vector<2x128xf32>
    %244 = arith.truncf %236 : vector<2x32xf32> to vector<2x32xbf16>
    %cst_58 = arith.constant dense<0.000000e+00> : vector<2x128xf32>
    %245 = tpu.matmul %244, %50, %cst_58 {dimension_numbers = #tpu.dot_dimension_numbers<[1], [0], [0], [1], [0, 0, 1, 1], [], []>} : vector<2x32xbf16>, vector<32x128xbf16>, vector<2x128xf32> -> vector<2x128xf32>
    %246 = arith.truncf %238 : vector<2x32xf32> to vector<2x32xbf16>
    %cst_59 = arith.constant dense<0.000000e+00> : vector<2x128xf32>
    %247 = tpu.matmul %246, %51, %cst_59 {dimension_numbers = #tpu.dot_dimension_numbers<[1], [0], [0], [1], [0, 0, 1, 1], [], []>} : vector<2x32xbf16>, vector<32x128xbf16>, vector<2x128xf32> -> vector<2x128xf32>
    %248 = arith.addf %245, %247 : vector<2x128xf32>
    %249 = vector.broadcast %52 : vector<1x128xf32> to vector<2x128xf32>
    %250 = arith.addf %248, %249 : vector<2x128xf32>
    %251 = tpu.concatenate %243, %250 in 0 : vector<2x128xf32>, vector<2x128xf32> -> vector<4x128xf32>
    %252 = tpu.concatenate %237, %239 in 0 : vector<2x32xf32>, vector<2x32xf32> -> vector<4x32xf32>
    %253 = arith.negf %251 : vector<4x128xf32>
    %254 = math.exp %253 : vector<4x128xf32>
    %cst_60 = arith.constant 1.000000e+00 : f32
    %255 = vector.broadcast %cst_60 : f32 to vector<4x128xf32>
    %256 = arith.addf %255, %254 : vector<4x128xf32>
    %257 = arith.divf %255, %256 : vector<4x128xf32>
    %258 = math.tanh %251 : vector<4x128xf32>
    %259 = vector.extract_strided_slice %257 {offsets = [0, 0], sizes = [4, 32], strides = [1, 1]} : vector<4x128xf32> to vector<4x32xf32>
    %260 = vector.extract_strided_slice %257 {offsets = [0, 32], sizes = [4, 32], strides = [1, 1]} : vector<4x128xf32> to vector<4x32xf32>
    %261 = vector.extract_strided_slice %258 {offsets = [0, 64], sizes = [4, 32], strides = [1, 1]} : vector<4x128xf32> to vector<4x32xf32>
    %262 = vector.extract_strided_slice %257 {offsets = [0, 96], sizes = [4, 32], strides = [1, 1]} : vector<4x128xf32> to vector<4x32xf32>
    %263 = arith.mulf %260, %252 : vector<4x32xf32>
    %264 = arith.mulf %259, %261 : vector<4x32xf32>
    %265 = arith.addf %263, %264 : vector<4x32xf32>
    %266 = math.tanh %265 : vector<4x32xf32>
    %267 = arith.mulf %262, %266 : vector<4x32xf32>
    %268 = vector.extract_strided_slice %267 {offsets = [0, 0], sizes = [2, 32], strides = [1, 1]} : vector<4x32xf32> to vector<2x32xf32>
    %269 = vector.extract_strided_slice %265 {offsets = [0, 0], sizes = [2, 32], strides = [1, 1]} : vector<4x32xf32> to vector<2x32xf32>
    %270 = vector.extract_strided_slice %267 {offsets = [2, 0], sizes = [2, 32], strides = [1, 1]} : vector<4x32xf32> to vector<2x32xf32>
    %271 = vector.extract_strided_slice %265 {offsets = [2, 0], sizes = [2, 32], strides = [1, 1]} : vector<4x32xf32> to vector<2x32xf32>
    %272 = vector.extract_strided_slice %48 {offsets = [14, 0], sizes = [2, 128], strides = [1, 1]} : vector<16x128xf32> to vector<2x128xf32>
    %273 = arith.truncf %268 : vector<2x32xf32> to vector<2x32xbf16>
    %cst_61 = arith.constant dense<0.000000e+00> : vector<2x128xf32>
    %274 = tpu.matmul %273, %49, %cst_61 {dimension_numbers = #tpu.dot_dimension_numbers<[1], [0], [0], [1], [0, 0, 1, 1], [], []>} : vector<2x32xbf16>, vector<32x128xbf16>, vector<2x128xf32> -> vector<2x128xf32>
    %275 = arith.addf %272, %274 : vector<2x128xf32>
    %276 = arith.truncf %268 : vector<2x32xf32> to vector<2x32xbf16>
    %cst_62 = arith.constant dense<0.000000e+00> : vector<2x128xf32>
    %277 = tpu.matmul %276, %50, %cst_62 {dimension_numbers = #tpu.dot_dimension_numbers<[1], [0], [0], [1], [0, 0, 1, 1], [], []>} : vector<2x32xbf16>, vector<32x128xbf16>, vector<2x128xf32> -> vector<2x128xf32>
    %278 = arith.truncf %270 : vector<2x32xf32> to vector<2x32xbf16>
    %cst_63 = arith.constant dense<0.000000e+00> : vector<2x128xf32>
    %279 = tpu.matmul %278, %51, %cst_63 {dimension_numbers = #tpu.dot_dimension_numbers<[1], [0], [0], [1], [0, 0, 1, 1], [], []>} : vector<2x32xbf16>, vector<32x128xbf16>, vector<2x128xf32> -> vector<2x128xf32>
    %280 = arith.addf %277, %279 : vector<2x128xf32>
    %281 = vector.broadcast %52 : vector<1x128xf32> to vector<2x128xf32>
    %282 = arith.addf %280, %281 : vector<2x128xf32>
    %283 = tpu.concatenate %275, %282 in 0 : vector<2x128xf32>, vector<2x128xf32> -> vector<4x128xf32>
    %284 = tpu.concatenate %269, %271 in 0 : vector<2x32xf32>, vector<2x32xf32> -> vector<4x32xf32>
    %285 = arith.negf %283 : vector<4x128xf32>
    %286 = math.exp %285 : vector<4x128xf32>
    %cst_64 = arith.constant 1.000000e+00 : f32
    %287 = vector.broadcast %cst_64 : f32 to vector<4x128xf32>
    %288 = arith.addf %287, %286 : vector<4x128xf32>
    %289 = arith.divf %287, %288 : vector<4x128xf32>
    %290 = math.tanh %283 : vector<4x128xf32>
    %291 = vector.extract_strided_slice %289 {offsets = [0, 0], sizes = [4, 32], strides = [1, 1]} : vector<4x128xf32> to vector<4x32xf32>
    %292 = vector.extract_strided_slice %289 {offsets = [0, 32], sizes = [4, 32], strides = [1, 1]} : vector<4x128xf32> to vector<4x32xf32>
    %293 = vector.extract_strided_slice %290 {offsets = [0, 64], sizes = [4, 32], strides = [1, 1]} : vector<4x128xf32> to vector<4x32xf32>
    %294 = vector.extract_strided_slice %289 {offsets = [0, 96], sizes = [4, 32], strides = [1, 1]} : vector<4x128xf32> to vector<4x32xf32>
    %295 = arith.mulf %292, %284 : vector<4x32xf32>
    %296 = arith.mulf %291, %293 : vector<4x32xf32>
    %297 = arith.addf %295, %296 : vector<4x32xf32>
    %298 = math.tanh %297 : vector<4x32xf32>
    %299 = arith.mulf %294, %298 : vector<4x32xf32>
    %300 = vector.extract_strided_slice %299 {offsets = [0, 0], sizes = [2, 32], strides = [1, 1]} : vector<4x32xf32> to vector<2x32xf32>
    %301 = vector.extract_strided_slice %297 {offsets = [0, 0], sizes = [2, 32], strides = [1, 1]} : vector<4x32xf32> to vector<2x32xf32>
    %302 = vector.extract_strided_slice %299 {offsets = [2, 0], sizes = [2, 32], strides = [1, 1]} : vector<4x32xf32> to vector<2x32xf32>
    %303 = vector.extract_strided_slice %297 {offsets = [2, 0], sizes = [2, 32], strides = [1, 1]} : vector<4x32xf32> to vector<2x32xf32>
    %304 = arith.truncf %300 : vector<2x32xf32> to vector<2x32xbf16>
    %cst_65 = arith.constant dense<0.000000e+00> : vector<2x128xf32>
    %305 = tpu.matmul %304, %50, %cst_65 {dimension_numbers = #tpu.dot_dimension_numbers<[1], [0], [0], [1], [0, 0, 1, 1], [], []>} : vector<2x32xbf16>, vector<32x128xbf16>, vector<2x128xf32> -> vector<2x128xf32>
    %306 = arith.truncf %302 : vector<2x32xf32> to vector<2x32xbf16>
    %cst_66 = arith.constant dense<0.000000e+00> : vector<2x128xf32>
    %307 = tpu.matmul %306, %51, %cst_66 {dimension_numbers = #tpu.dot_dimension_numbers<[1], [0], [0], [1], [0, 0, 1, 1], [], []>} : vector<2x32xbf16>, vector<32x128xbf16>, vector<2x128xf32> -> vector<2x128xf32>
    %308 = arith.addf %305, %307 : vector<2x128xf32>
    %309 = vector.broadcast %52 : vector<1x128xf32> to vector<2x128xf32>
    %310 = arith.addf %308, %309 : vector<2x128xf32>
    %311 = arith.negf %310 : vector<2x128xf32>
    %312 = math.exp %311 : vector<2x128xf32>
    %cst_67 = arith.constant 1.000000e+00 : f32
    %313 = vector.broadcast %cst_67 : f32 to vector<2x128xf32>
    %314 = arith.addf %313, %312 : vector<2x128xf32>
    %315 = arith.divf %313, %314 : vector<2x128xf32>
    %316 = math.tanh %310 : vector<2x128xf32>
    %317 = vector.extract_strided_slice %315 {offsets = [0, 0], sizes = [2, 32], strides = [1, 1]} : vector<2x128xf32> to vector<2x32xf32>
    %318 = vector.extract_strided_slice %315 {offsets = [0, 32], sizes = [2, 32], strides = [1, 1]} : vector<2x128xf32> to vector<2x32xf32>
    %319 = vector.extract_strided_slice %316 {offsets = [0, 64], sizes = [2, 32], strides = [1, 1]} : vector<2x128xf32> to vector<2x32xf32>
    %320 = vector.extract_strided_slice %315 {offsets = [0, 96], sizes = [2, 32], strides = [1, 1]} : vector<2x128xf32> to vector<2x32xf32>
    %321 = arith.mulf %318, %303 : vector<2x32xf32>
    %322 = arith.mulf %317, %319 : vector<2x32xf32>
    %323 = arith.addf %321, %322 : vector<2x32xf32>
    %324 = math.tanh %323 : vector<2x32xf32>
    %325 = arith.mulf %320, %324 : vector<2x32xf32>
    %c0_68 = arith.constant 0 : index
    %c0_69 = arith.constant 0 : index
    %c0_70 = arith.constant 0 : index
    %326 = vector.load %arg12[%c0_68, %c0_69, %c0_70] : memref<2x2x32xf32, #tpu.memory_space<vmem>>, vector<1x2x32xf32>
    %327 = vector.shape_cast %326 : vector<1x2x32xf32> to vector<2x32xf32>
    %328 = vector.shape_cast %300 : vector<2x32xf32> to vector<1x2x32xf32>
    tpu.vector_store %arg12[%c0_68, %c0_69, %c0_70], %328 {strides = array<i32>} : memref<2x2x32xf32, #tpu.memory_space<vmem>>, vector<1x2x32xf32>,
    %c0_71 = arith.constant 0 : index
    %c0_72 = arith.constant 0 : index
    %c0_73 = arith.constant 0 : index
    %329 = vector.load %arg13[%c0_71, %c0_72, %c0_73] : memref<2x2x32xf32, #tpu.memory_space<vmem>>, vector<1x2x32xf32>
    %330 = vector.shape_cast %329 : vector<1x2x32xf32> to vector<2x32xf32>
    %331 = vector.shape_cast %301 : vector<2x32xf32> to vector<1x2x32xf32>
    tpu.vector_store %arg13[%c0_71, %c0_72, %c0_73], %331 {strides = array<i32>} : memref<2x2x32xf32, #tpu.memory_space<vmem>>, vector<1x2x32xf32>,
    %c1_74 = arith.constant 1 : index
    %c0_75 = arith.constant 0 : index
    %c0_76 = arith.constant 0 : index
    %332 = vector.load %arg12[%c1_74, %c0_75, %c0_76] : memref<2x2x32xf32, #tpu.memory_space<vmem>>, vector<1x2x32xf32>
    %333 = vector.shape_cast %332 : vector<1x2x32xf32> to vector<2x32xf32>
    %334 = vector.shape_cast %325 : vector<2x32xf32> to vector<1x2x32xf32>
    tpu.vector_store %arg12[%c1_74, %c0_75, %c0_76], %334 {strides = array<i32>} : memref<2x2x32xf32, #tpu.memory_space<vmem>>, vector<1x2x32xf32>,
    %c1_77 = arith.constant 1 : index
    %c0_78 = arith.constant 0 : index
    %c0_79 = arith.constant 0 : index
    %335 = vector.load %arg13[%c1_77, %c0_78, %c0_79] : memref<2x2x32xf32, #tpu.memory_space<vmem>>, vector<1x2x32xf32>
    %336 = vector.shape_cast %335 : vector<1x2x32xf32> to vector<2x32xf32>
    %337 = vector.shape_cast %323 : vector<2x32xf32> to vector<1x2x32xf32>
    tpu.vector_store %arg13[%c1_77, %c0_78, %c0_79], %337 {strides = array<i32>} : memref<2x2x32xf32, #tpu.memory_space<vmem>>, vector<1x2x32xf32>,
    %c0_80 = arith.constant 0 : index
    %c0_81 = arith.constant 0 : index
    %338 = vector.load %arg9[%c0_80, %c0_81] : memref<32x1xf32, #tpu.memory_space<vmem>>, vector<32x1xf32>
    %cst_82 = arith.constant dense<0.000000e+00> : vector<2x1xf32>
    %339 = tpu.matmul %325, %338, %cst_82 {dimension_numbers = #tpu.dot_dimension_numbers<[1], [0], [0], [1], [0, 0, 1, 1], [], []>} : vector<2x32xf32>, vector<32x1xf32>, vector<2x1xf32> -> vector<2x1xf32>
    %c0_83 = arith.constant 0 : index
    %c0_84 = arith.constant 0 : index
    %340 = vector.load %arg10[%c0_83, %c0_84] : memref<1x1xf32, #tpu.memory_space<vmem>>, vector<1x1xf32>
    %341 = vector.broadcast %340 : vector<1x1xf32> to vector<2x1xf32>
    %342 = arith.addf %339, %341 : vector<2x1xf32>
    %343 = arith.negf %342 : vector<2x1xf32>
    %344 = math.exp %343 : vector<2x1xf32>
    %cst_85 = arith.constant 1.000000e+00 : f32
    %345 = vector.broadcast %cst_85 : f32 to vector<2x1xf32>
    %346 = arith.addf %345, %344 : vector<2x1xf32>
    %347 = arith.divf %345, %346 : vector<2x1xf32>
    %c0_86 = arith.constant 0 : index
    %c0_87 = arith.constant 0 : index
    %348 = vector.load %arg11[%c0_86, %c0_87] : memref<2x1xf32, #tpu.memory_space<vmem>>, vector<2x1xf32>
    tpu.vector_store %arg11[%c0_86, %c0_87], %347 {strides = array<i32>} : memref<2x1xf32, #tpu.memory_space<vmem>>, vector<2x1xf32>,
    return
  }
  func.func @transform_0(%arg0: i32, %arg1: memref<16xi32, #tpu.memory_space<smem>>) -> (i32, i32) {
    %c0_i32 = arith.constant 0 : i32
    %c0_i32_0 = arith.constant 0 : i32
    %c0_i32_1 = arith.constant 0 : i32
    return %c0_i32, %c0_i32_0 : i32, i32
  }
  func.func @transform_1(%arg0: i32, %arg1: memref<16xi32, #tpu.memory_space<smem>>) -> (i32, i32, i32) {
    %c0_i32 = arith.constant 0 : i32
    %c0_i32_0 = arith.constant 0 : i32
    %c0_i32_1 = arith.constant 0 : i32
    %c0_i32_2 = arith.constant 0 : i32
    return %c0_i32, %c0_i32_0, %c0_i32_1 : i32, i32, i32
  }
  func.func @transform_2(%arg0: i32, %arg1: memref<16xi32, #tpu.memory_space<smem>>) -> (i32, i32, i32) {
    %c0_i32 = arith.constant 0 : i32
    %c0_i32_0 = arith.constant 0 : i32
    %c0_i32_1 = arith.constant 0 : i32
    %c0_i32_2 = arith.constant 0 : i32
    return %c0_i32, %c0_i32_0, %c0_i32_1 : i32, i32, i32
  }
  func.func @transform_3(%arg0: i32, %arg1: memref<16xi32, #tpu.memory_space<smem>>) -> (i32, i32) {
    %c0_i32 = arith.constant 0 : i32
    %c0_i32_0 = arith.constant 0 : i32
    %c0_i32_1 = arith.constant 0 : i32
    return %c0_i32, %c0_i32_0 : i32, i32
  }
  func.func @transform_4(%arg0: i32, %arg1: memref<16xi32, #tpu.memory_space<smem>>) -> (i32, i32) {
    %c0_i32 = arith.constant 0 : i32
    %c0_i32_0 = arith.constant 0 : i32
    %c0_i32_1 = arith.constant 0 : i32
    return %c0_i32, %c0_i32_0 : i32, i32
  }
  func.func @transform_5(%arg0: i32, %arg1: memref<16xi32, #tpu.memory_space<smem>>) -> (i32, i32) {
    %c0_i32 = arith.constant 0 : i32
    %c0_i32_0 = arith.constant 0 : i32
    %c0_i32_1 = arith.constant 0 : i32
    return %c0_i32, %c0_i32_0 : i32, i32
  }
  func.func @transform_6(%arg0: i32, %arg1: memref<16xi32, #tpu.memory_space<smem>>) -> (i32, i32) {
    %c0_i32 = arith.constant 0 : i32
    %c0_i32_0 = arith.constant 0 : i32
    %c0_i32_1 = arith.constant 0 : i32
    return %c0_i32, %c0_i32_0 : i32, i32
  }
  func.func @transform_7(%arg0: i32, %arg1: memref<16xi32, #tpu.memory_space<smem>>) -> (i32, i32) {
    %c0_i32 = arith.constant 0 : i32
    %c0_i32_0 = arith.constant 0 : i32
    %c0_i32_1 = arith.constant 0 : i32
    return %c0_i32, %c0_i32_0 : i32, i32
  }
  func.func @transform_8(%arg0: i32, %arg1: memref<16xi32, #tpu.memory_space<smem>>) -> (i32, i32) {
    %c0_i32 = arith.constant 0 : i32
    %c0_i32_0 = arith.constant 0 : i32
    %c0_i32_1 = arith.constant 0 : i32
    return %c0_i32, %c0_i32_0 : i32, i32
  }
  func.func @transform_9(%arg0: i32, %arg1: memref<16xi32, #tpu.memory_space<smem>>) -> (i32, i32) {
    %c0_i32 = arith.constant 0 : i32
    %c0_i32_0 = arith.constant 0 : i32
    %c0_i32_1 = arith.constant 0 : i32
    return %c0_i32, %c0_i32_0 : i32, i32
  }
  func.func @transform_10(%arg0: i32, %arg1: memref<16xi32, #tpu.memory_space<smem>>) -> (i32, i32, i32) {
    %c0_i32 = arith.constant 0 : i32
    %c0_i32_0 = arith.constant 0 : i32
    %c0_i32_1 = arith.constant 0 : i32
    %c0_i32_2 = arith.constant 0 : i32
    return %c0_i32, %c0_i32_0, %c0_i32_1 : i32, i32, i32
  }
  func.func @transform_11(%arg0: i32, %arg1: memref<16xi32, #tpu.memory_space<smem>>) -> (i32, i32, i32) {
    %c0_i32 = arith.constant 0 : i32
    %c0_i32_0 = arith.constant 0 : i32
    %c0_i32_1 = arith.constant 0 : i32
    %c0_i32_2 = arith.constant 0 : i32
    return %c0_i32, %c0_i32_0, %c0_i32_1 : i32, i32, i32
  }
}

</mosaic_0001>

<llo_original>
// kernel: sentiment_net_forward.1
$region0: #{sentiment_net_forward.1}
  #allocation0 [shape = 'u32[]', space=smem, size = 0x4, offset = 0x4, fixed_abs, tag = 'smem constant byte address 0x4 - core index']
  #allocation1 [shape = 'u32[144,128]{1,0:T(1,128)}', space=vmem, size = 0x12000, scoped, tag = 'internal scratch']
  #allocation2 [shape = 's32[1]{0}', space=sflag, size = 0x4, scoped, tag = 'scoped memory for sentiment_net_forward.1']
  #allocation3 [shape = 'u8[512]{0}', space=smem, size = 0x200, scoped, tag = 'prefetched SMEM operand 0']
  #allocation4 [shape = 'f32[1,1]{1,0:T(1,128)S(1)}', space=vmem, size = 0x200, scoped, tag = 'scoped memory for sentiment_net_forward.1']
  %s0 = inlined_call_operand.vmem [shape: s32[16], index: 0, kind: input, shape index: {}]
  %s1 = inlined_call_operand.vmem [shape: f32[50,128], index: 1, kind: input, shape index: {}]
  %s2 = inlined_call_operand.vmem [shape: f32[2,2,32], index: 2, kind: input, shape index: {}]
  %s3 = inlined_call_operand.vmem [shape: f32[2,2,32], index: 3, kind: input, shape index: {}]
  %s4 = inlined_call_operand.hbm [shape: bf16[32,128], index: 4, kind: input, shape index: {}]
  %s5 = inlined_call_operand.vmem [shape: bf16[32,128], index: 5, kind: input, shape index: {}]
  %s6 = inlined_call_operand.hbm [shape: bf16[32,128], index: 6, kind: input, shape index: {}]
  %s7 = inlined_call_operand.hbm [shape: f32[1,128], index: 7, kind: input, shape index: {}]
  %s8 = inlined_call_operand.vmem [shape: f32[32,1], index: 8, kind: input, shape index: {}]
  %s9 = inlined_call_operand.<no memory space> [shape: f32[1,1], index: 9, kind: input, shape index: {}]
  %s10 = inlined_call_operand.vmem [shape: f32[2,1], index: 10, kind: output, shape index: {0}]
  %s11 = inlined_call_operand.hbm [shape: f32[2,2,32], index: 11, kind: output, shape index: {1}]
  %s12 = inlined_call_operand.hbm [shape: f32[2,2,32], index: 12, kind: output, shape index: {2}]
  %13 = xla_tuple %s10, %s11, %s12
  %s14 = sld [smem:[#allocation0]]
  $region74: #{sentiment_net_forward.1} parent=0
    _
  %s16 = ssub.s32 1, %s14
  %s17 = scalar_select 0, %s16, %s14
  %s18 = sshll.u32 %s0, 4
  %s19 = int_to_ptr.vmem [resolvable:$true] %s18
  %21 = dma.vmem_to_smem %s19, 16, [#allocation3], [#allocation2]
  %v22 = vstv %s9
  %23 = vst [vmem:[#allocation4] sm:$0x1] %v22
  %24 = dma.done [#allocation2], 16
  %25 = sfence
  $region1: #{sentiment_net_forward.1} parent=0
    #allocation5 [shape = 'u8[8192]{0}', space=vmem, size = 0x2000, scoped, tag = 'input window, operand 4, single buffered']
    #allocation6 [shape = 's32[1]{0}', space=sflag, size = 0x4, scoped, tag = 'scoped memory for sentiment_net_forward.1']
    #allocation7 [shape = 's32[1]{0}', space=sflag, size = 0x4, scoped, tag = 'scoped memory for sentiment_net_forward.1']
    #allocation8 [shape = 'u8[8192]{0}', space=vmem, size = 0x2000, scoped, tag = 'input window, operand 6, single buffered']
    #allocation9 [shape = 's32[1]{0}', space=sflag, size = 0x4, scoped, tag = 'scoped memory for sentiment_net_forward.1']
    #allocation10 [shape = 'u8[512]{0}', space=vmem, size = 0x400, scoped, tag = 'input window, operand 7, single buffered']
    #allocation11 [shape = 'u8[2048]{0}', space=vmem, size = 0x800, scoped, tag = 'output window, operand 1, single buffered']
    #allocation12 [shape = 'u8[2048]{0}', space=vmem, size = 0x800, scoped, tag = 'output window, operand 2, single buffered']
    #allocation13 [shape = 's32[1]{0}', space=sflag, size = 0x4, scoped, tag = 'scoped memory for sentiment_net_forward.1']
    %26 = vsyncpa [#allocation6], 0
    %27 = vsyncpa [#allocation9], 0
    %28 = vsyncpa [#allocation7], 0
    %29 = vsyncpa [#allocation13], 0
    // Predicated region
    $region2: #{sentiment_net_forward.1} parent=1 // pred_check
      _
    $region3: #{sentiment_net_forward.1} parent=1 // pred_check_branch
      %31 = sbr.rel (0) target = $region5
    $region4: #{sentiment_net_forward.1} parent=1 // pred_region
      _
    $region5: #{sentiment_net_forward.1} parent=1 // pred_fallthru
      _
    // Predicated region
    $region6: #{sentiment_net_forward.1} parent=1 // pred_check
      _
    $region7: #{sentiment_net_forward.1} parent=1 // pred_check_branch
      %33 = sbr.rel (0) target = $region9
    $region8: #{sentiment_net_forward.1} parent=1 // pred_region
      _
    $region9: #{sentiment_net_forward.1} parent=1 // pred_fallthru
      _
    // Predicated region
    $region10: #{sentiment_net_forward.1} parent=1 // pred_check
      _
    $region11: #{sentiment_net_forward.1} parent=1 // pred_check_branch
      %35 = sbr.rel (0) target = $region13
    $region12: #{sentiment_net_forward.1} parent=1 // pred_region
      _
    $region13: #{sentiment_net_forward.1} parent=1 // pred_fallthru
      _
    // Predicated region
    $region14: #{sentiment_net_forward.1} parent=1 // pred_check
      _
    $region15: #{sentiment_net_forward.1} parent=1 // pred_check_branch
      %37 = sbr.rel (0) target = $region17
    $region16: #{sentiment_net_forward.1} parent=1 // pred_region
      %s39 = ssub.s32 256, 256
      %40 = vsyncadd [#allocation6], %s39
      %s41 = sshll.u32 [#allocation5], 4
      %s42 = int_to_ptr.vmem [resolvable:$true] %s41
      %47 = dma.hbm_to_vmem [thread:$0]  %s4, 256, %s42, [#allocation6], 64, 64, 4
    $region17: #{sentiment_net_forward.1} parent=1 // pred_fallthru
      _
    // Predicated region
    $region18: #{sentiment_net_forward.1} parent=1 // pred_check
      _
    $region19: #{sentiment_net_forward.1} parent=1 // pred_check_branch
      %49 = sbr.rel (0) target = $region21
    $region20: #{sentiment_net_forward.1} parent=1 // pred_region
      _
    $region21: #{sentiment_net_forward.1} parent=1 // pred_fallthru
      _
    // Predicated region
    $region22: #{sentiment_net_forward.1} parent=1 // pred_check
      _
    $region23: #{sentiment_net_forward.1} parent=1 // pred_check_branch
      %51 = sbr.rel (0) target = $region25
    $region24: #{sentiment_net_forward.1} parent=1 // pred_region
      %s53 = ssub.s32 256, 256
      %54 = vsyncadd [#allocation9], %s53
      %s55 = sshll.u32 [#allocation8], 4
      %s56 = int_to_ptr.vmem [resolvable:$true] %s55
      %61 = dma.hbm_to_vmem [thread:$0]  %s6, 256, %s56, [#allocation9], 64, 64, 4
    $region25: #{sentiment_net_forward.1} parent=1 // pred_fallthru
      _
    // Predicated region
    $region26: #{sentiment_net_forward.1} parent=1 // pred_check
      _
    $region27: #{sentiment_net_forward.1} parent=1 // pred_check_branch
      %63 = sbr.rel (0) target = $region29
    $region28: #{sentiment_net_forward.1} parent=1 // pred_region
      %s65 = ssub.s32 16, 16
      %66 = vsyncadd [#allocation9], %s65
      %s68 = sshll.u32 [#allocation10], 4
      %s69 = int_to_ptr.vmem [resolvable:$true] %s68
      %71 = dma.hbm_to_vmem [thread:$0]  %s7, 16, %s69, [#allocation9]
    $region29: #{sentiment_net_forward.1} parent=1 // pred_fallthru
      _
    // Predicated region
    $region30: #{sentiment_net_forward.1} parent=1 // pred_check
      _
    $region31: #{sentiment_net_forward.1} parent=1 // pred_check_branch
      %73 = sbr.rel (0) target = $region33
    $region32: #{sentiment_net_forward.1} parent=1 // pred_region
      _
    $region33: #{sentiment_net_forward.1} parent=1 // pred_fallthru
      _
    // Predicated region
    $region34: #{sentiment_net_forward.1} parent=1 // pred_check
      _
    $region35: #{sentiment_net_forward.1} parent=1 // pred_check_branch
      %75 = sbr.rel (0) target = $region37
    $region36: #{sentiment_net_forward.1} parent=1 // pred_region
      _
    $region37: #{sentiment_net_forward.1} parent=1 // pred_fallthru
      _
    // Predicated region
    $region38: #{sentiment_net_forward.1} parent=1 // pred_check
      _
    $region39: #{sentiment_net_forward.1} parent=1 // pred_check_branch
      %77 = sbr.rel (0) target = $region41
    $region40: #{sentiment_net_forward.1} parent=1 // pred_region
      %78 = dma.done [#allocation6], 256
    $region41: #{sentiment_net_forward.1} parent=1 // pred_fallthru
      _
    // Predicated region
    $region42: #{sentiment_net_forward.1} parent=1 // pred_check
      _
    $region43: #{sentiment_net_forward.1} parent=1 // pred_check_branch
      %80 = sbr.rel (0) target = $region45
    $region44: #{sentiment_net_forward.1} parent=1 // pred_region
      %81 = dma.done [#allocation9], 256
    $region45: #{sentiment_net_forward.1} parent=1 // pred_fallthru
      _
    // Predicated region
    $region46: #{sentiment_net_forward.1} parent=1 // pred_check
      _
    $region47: #{sentiment_net_forward.1} parent=1 // pred_check_branch
      %83 = sbr.rel (0) target = $region49
    $region48: #{sentiment_net_forward.1} parent=1 // pred_region
      %84 = dma.done [#allocation9], 16
    $region49: #{sentiment_net_forward.1} parent=1 // pred_fallthru
      _
    %s86 = sld [smem:[#allocation3]]
    %s87 = scalar_lea.vmem %s1, %s86
    %v88 = vld [vmem:[%s87] sm:$0x1]
    %s89 = sld [smem:[#allocation3 + $0x1]]
    %s90 = scalar_lea.vmem %s1, %s89
    %v91 = vld [vmem:[%s90] sm:$0x1]
    %s92 = sld [smem:[#allocation3 + $0x2]]
    %s93 = scalar_lea.vmem %s1, %s92
    %v94 = vld [vmem:[%s93] sm:$0x1]
    %s95 = sld [smem:[#allocation3 + $0x3]]
    %s96 = scalar_lea.vmem %s1, %s95
    %v97 = vld [vmem:[%s96] sm:$0x1]
    %s98 = sld [smem:[#allocation3 + $0x4]]
    %s99 = scalar_lea.vmem %s1, %s98
    %v100 = vld [vmem:[%s99] sm:$0x1]
    %s101 = sld [smem:[#allocation3 + $0x5]]
    %s102 = scalar_lea.vmem %s1, %s101
    %v103 = vld [vmem:[%s102] sm:$0x1]
    %s104 = sld [smem:[#allocation3 + $0x6]]
    %s105 = scalar_lea.vmem %s1, %s104
    %v106 = vld [vmem:[%s105] sm:$0x1]
    %s107 = sld [smem:[#allocation3 + $0x7]]
    %s108 = scalar_lea.vmem %s1, %s107
    %v109 = vld [vmem:[%s108] sm:$0x1]
    %s110 = sld [smem:[#allocation3 + $0x8]]
    %s111 = scalar_lea.vmem %s1, %s110
    %v112 = vld [vmem:[%s111] sm:$0x1]
    %s113 = sld [smem:[#allocation3 + $0x9]]
    %s114 = scalar_lea.vmem %s1, %s113
    %v115 = vld [vmem:[%s114] sm:$0x1]
    %s116 = sld [smem:[#allocation3 + $0xa]]
    %s117 = scalar_lea.vmem %s1, %s116
    %v118 = vld [vmem:[%s117] sm:$0x1]
    %s119 = sld [smem:[#allocation3 + $0xb]]
    %s120 = scalar_lea.vmem %s1, %s119
    %v121 = vld [vmem:[%s120] sm:$0x1]
    %s122 = sld [smem:[#allocation3 + $0xc]]
    %s123 = scalar_lea.vmem %s1, %s122
    %v124 = vld [vmem:[%s123] sm:$0x1]
    %s125 = sld [smem:[#allocation3 + $0xd]]
    %s126 = scalar_lea.vmem %s1, %s125
    %v127 = vld [vmem:[%s126] sm:$0x1]
    %s128 = sld [smem:[#allocation3 + $0xe]]
    %s129 = scalar_lea.vmem %s1, %s128
    %v130 = vld [vmem:[%s129] sm:$0x1]
    %s131 = sld [smem:[#allocation3 + $0xf]]
    %s132 = scalar_lea.vmem %s1, %s131
    %v133 = vld [vmem:[%s132] sm:$0x1]
    %v135 = vrot.slane %v91, 7
    %v138 = vrot.slane %v94, 6
    %v141 = vrot.slane %v97, 5
    %v144 = vrot.slane %v100, 4
    %v147 = vrot.slane %v103, 3
    %v150 = vrot.slane %v106, 2
    %v153 = vrot.slane %v109, 1
    %v156 = vrot.slane %v115, 7
    %v159 = vrot.slane %v118, 6
    %v162 = vrot.slane %v121, 5
    %v165 = vrot.slane %v124, 4
    %v168 = vrot.slane %v127, 3
    %v171 = vrot.slane %v130, 2
    %v174 = vrot.slane %v133, 1
    %vm176 = vcmask 1040384
    %v177 = vsel %vm176, %v88, %v135
    %vm178 = vcmask 1041408
    %v179 = vsel %vm178, %v177, %v138
    %vm180 = vcmask 1042432
    %v181 = vsel %vm180, %v179, %v141
    %vm182 = vcmask 1043456
    %v183 = vsel %vm182, %v181, %v144
    %vm184 = vcmask 1044480
    %v185 = vsel %vm184, %v183, %v147
    %vm186 = vcmask 1045504
    %v187 = vsel %vm186, %v185, %v150
    %vm188 = vcmask 1046528
    %v189 = vsel %vm188, %v187, %v153
    %v190 = vsel %vm176, %v112, %v156
    %v191 = vsel %vm178, %v190, %v159
    %v192 = vsel %vm180, %v191, %v162
    %v193 = vsel %vm182, %v192, %v165
    %v194 = vsel %vm184, %v193, %v168
    %v195 = vsel %vm186, %v194, %v171
    %v196 = vsel %vm188, %v195, %v174
    %v197 = vld [vmem:[#allocation5] sm:$0xf]
    %v198 = vld [vmem:[#allocation5 + $0x4] sm:$0xf]
    %v199 = vld [vmem:[#allocation5 + $0x8] sm:$0xf]
    %v200 = vld [vmem:[#allocation5 + $0xc] sm:$0xf]
    %v201 = vld [vmem:[%s5] sm:$0xf]
    %v202 = vld [vmem:[%s5 + $0x4] sm:$0xf]
    %v203 = vld [vmem:[%s5 + $0x8] sm:$0xf]
    %v204 = vld [vmem:[%s5 + $0xc] sm:$0xf]
    %v205 = vld [vmem:[#allocation8] sm:$0xf]
    %v206 = vld [vmem:[#allocation8 + $0x4] sm:$0xf]
    %v207 = vld [vmem:[#allocation8 + $0x8] sm:$0xf]
    %v208 = vld [vmem:[#allocation8 + $0xc] sm:$0xf]
    %v209 = vld [vmem:[#allocation10] sm:$0x1]
    %v210 = vld [vmem:[%s2] sm:$0x3]
    %v211 = vld [vmem:[%s3] sm:$0x3]
    %s212 = scalar_lea.vmem %s2, 2
    %v213 = vld [vmem:[%s212] sm:$0x3]
    %s214 = scalar_lea.vmem %s3, 2
    %v215 = vld [vmem:[%s214] sm:$0x3]
    %v216 = vpack.c.bf16 %v210, %v210
    %v221 = vunpack.c.l.b16 %v197
    %v222 = vunpack.c.l.b16 %v198
    %v223 = vunpack.c.l.b16 %v199
    %v224 = vunpack.c.l.b16 %v200
    %v225 = vpack.c.b16 %v222, %v221
    %v226 = vpack.c.b16 %v224, %v223
    %vm229 = vcmask 261120
    %v231 = vsel %vm229, %v216, 0
    %233 = vmatprep.subr.bf16.mxu0 0
    %234 = vmatpush1.bf16.msra.mxu0 %v225
    %235 = vmatprep.subr.bf16.mxu0 0
    %236 = vmatpush1.bf16.msra.mxu0 %v226
    %237 = vmatprep.subr.bf16.mxu0 0
    %238 = vmatpush1.bf16.msra.mxu0 0
    %239 = vmatprep.subr.bf16.mxu0 0
    %240 = vmatpush1.bf16.msra.mxu0 0
    %241 = vmatprep.subr.bf16.mxu0 0
    %242 = vmatpush1.bf16.msra.mxu0 0
    %243 = vmatprep.subr.bf16.mxu0 0
    %244 = vmatpush1.bf16.msra.mxu0 0
    %245 = vmatprep.subr.bf16.mxu0 0
    %246 = vmatpush1.bf16.msra.mxu0 0
    %247 = vmatprep.subr.bf16.mxu0 0
    %248 = vmatpush1.bf16.msra.mxu0 0
    %249 = vmatprep.subr.bf16.mxu0 0
    %250 = vmatpush1.bf16.msra.mxu0 0
    %251 = vmatprep.subr.bf16.mxu0 0
    %252 = vmatpush1.bf16.msra.mxu0 0
    %253 = vmatprep.subr.bf16.mxu0 0
    %254 = vmatpush1.bf16.msra.mxu0 0
    %255 = vmatprep.subr.bf16.mxu0 0
    %256 = vmatpush1.bf16.msra.mxu0 0
    %257 = vmatprep.subr.bf16.mxu0 0
    %258 = vmatpush1.bf16.msra.mxu0 0
    %259 = vmatprep.subr.bf16.mxu0 0
    %260 = vmatpush1.bf16.msra.mxu0 0
    %261 = vmatprep.subr.bf16.mxu0 0
    %262 = vmatpush1.bf16.msra.mxu0 0
    %263 = vmatprep.subr.bf16.mxu0 0
    %264 = vmatpush1.bf16.msra.mxu0 0
    %265 = vmatprep.mubr.bf16.mxu0 0
    %266 = vmatmul.mubr.bf16.gmra.mrb[0].mxu0 %v231
    %v267 = vpop.f32.mrb[0].mxu0
    %v268 = vadd.f32 0.0, %v267
    %v269 = vpop.f32.mrb[0].mxu0
    %v270 = vpop.f32.mrb[0].mxu0
    %v271 = vpop.f32.mrb[0].mxu0
    %272 = vdwg.mxu0
    %v273 = vadd.f32 %v189, %v268
    %v274 = vxor.u32 %v273, 2147483648
    %v275 = vmul.f32 %v274, 1.442695
    %v276 = vpow.pop %v275
    %v277 = vadd.f32 %v276, 1.0
    %v278 = vrcp.pop %v277
    %v279 = vmul.f32 1.0, %v278
    %v280 = vtanh.pop %v273
    %282 = vrot.lane.b32.xlu0 %v211, 32
    %v283 = vpop.permute.xlu0 %282
    %v285 = vmul.f32 %v279, %v283
    %287 = vrot.lane.b32.xlu0 %v280, 64
    %v288 = vpop.permute.xlu0 %287
    %v290 = vmul.f32 %v279, %v288
    %292 = vrot.lane.b32.xlu0 %v290, 32
    %v293 = vpop.permute.xlu0 %292
    %v295 = vadd.f32 %v285, %v293
    %v296 = vtanh.pop %v295
    %298 = vrot.lane.b32.xlu0 %v296, 64
    %v299 = vpop.permute.xlu0 %298
    %v301 = vmul.f32 %v279, %v299
    %v302 = vpack.c.bf16 %v301, %v301
    %304 = vrot.lane.b32.xlu0 %v302, 32
    %v305 = vpop.permute.xlu0 %304
    %v307 = vsel %vm229, %v305, 0
    %309 = vmatprep.subr.bf16.mxu0 0
    %310 = vmatpush1.bf16.msra.mxu0 %v225
    %311 = vmatprep.subr.bf16.mxu0 0
    %312 = vmatpush1.bf16.msra.mxu0 %v226
    %313 = vmatprep.subr.bf16.mxu0 0
    %314 = vmatpush1.bf16.msra.mxu0 0
    %315 = vmatprep.subr.bf16.mxu0 0
    %316 = vmatpush1.bf16.msra.mxu0 0
    %317 = vmatprep.subr.bf16.mxu0 0
    %318 = vmatpush1.bf16.msra.mxu0 0
    %319 = vmatprep.subr.bf16.mxu0 0
    %320 = vmatpush1.bf16.msra.mxu0 0
    %321 = vmatprep.subr.bf16.mxu0 0
    %322 = vmatpush1.bf16.msra.mxu0 0
    %323 = vmatprep.subr.bf16.mxu0 0
    %324 = vmatpush1.bf16.msra.mxu0 0
    %325 = vmatprep.subr.bf16.mxu0 0
    %326 = vmatpush1.bf16.msra.mxu0 0
    %327 = vmatprep.subr.bf16.mxu0 0
    %328 = vmatpush1.bf16.msra.mxu0 0
    %329 = vmatprep.subr.bf16.mxu0 0
    %330 = vmatpush1.bf16.msra.mxu0 0
    %331 = vmatprep.subr.bf16.mxu0 0
    %332 = vmatpush1.bf16.msra.mxu0 0
    %333 = vmatprep.subr.bf16.mxu0 0
    %334 = vmatpush1.bf16.msra.mxu0 0
    %335 = vmatprep.subr.bf16.mxu0 0
    %336 = vmatpush1.bf16.msra.mxu0 0
    %337 = vmatprep.subr.bf16.mxu0 0
    %338 = vmatpush1.bf16.msra.mxu0 0
    %339 = vmatprep.subr.bf16.mxu0 0
    %340 = vmatpush1.bf16.msra.mxu0 0
    %341 = vmatprep.mubr.bf16.mxu0 0
    %342 = vmatmul.mubr.bf16.gmra.mrb[0].mxu0 %v307
    %v343 = vpop.f32.mrb[0].mxu0
    %v344 = vadd.f32 0.0, %v343
    %v345 = vpop.f32.mrb[0].mxu0
    %v346 = vpop.f32.mrb[0].mxu0
    %v347 = vpop.f32.mrb[0].mxu0
    %348 = vdwg.mxu0
    %v350 = vrot.slane %v344, 6
    %v352 = vadd.f32 %v189, %v350
    %v353 = vpack.c.bf16 %v213, %v213
    %v358 = vunpack.c.l.b16 %v205
    %v359 = vunpack.c.l.b16 %v206
    %v360 = vunpack.c.l.b16 %v207
    %v361 = vunpack.c.l.b16 %v208
    %v362 = vpack.c.b16 %v359, %v358
    %v363 = vpack.c.b16 %v361, %v360
    %v367 = vsel %vm229, %v353, 0
    %369 = vmatprep.subr.bf16.mxu0 0
    %370 = vmatpush1.bf16.msra.mxu0 %v362
    %371 = vmatprep.subr.bf16.mxu0 0
    %372 = vmatpush1.bf16.msra.mxu0 %v363
    %373 = vmatprep.subr.bf16.mxu0 0
    %374 = vmatpush1.bf16.msra.mxu0 0
    %375 = vmatprep.subr.bf16.mxu0 0
    %376 = vmatpush1.bf16.msra.mxu0 0
    %377 = vmatprep.subr.bf16.mxu0 0
    %378 = vmatpush1.bf16.msra.mxu0 0
    %379 = vmatprep.subr.bf16.mxu0 0
    %380 = vmatpush1.bf16.msra.mxu0 0
    %381 = vmatprep.subr.bf16.mxu0 0
    %382 = vmatpush1.bf16.msra.mxu0 0
    %383 = vmatprep.subr.bf16.mxu0 0
    %384 = vmatpush1.bf16.msra.mxu0 0
    %385 = vmatprep.subr.bf16.mxu0 0
    %386 = vmatpush1.bf16.msra.mxu0 0
    %387 = vmatprep.subr.bf16.mxu0 0
    %388 = vmatpush1.bf16.msra.mxu0 0
    %389 = vmatprep.subr.bf16.mxu0 0
    %390 = vmatpush1.bf16.msra.mxu0 0
    %391 = vmatprep.subr.bf16.mxu0 0
    %392 = vmatpush1.bf16.msra.mxu0 0
    %393 = vmatprep.subr.bf16.mxu0 0
    %394 = vmatpush1.bf16.msra.mxu0 0
    %395 = vmatprep.subr.bf16.mxu0 0
    %396 = vmatpush1.bf16.msra.mxu0 0
    %397 = vmatprep.subr.bf16.mxu0 0
    %398 = vmatpush1.bf16.msra.mxu0 0
    %399 = vmatprep.subr.bf16.mxu0 0
    %400 = vmatpush1.bf16.msra.mxu0 0
    %401 = vmatprep.mubr.bf16.mxu0 0
    %402 = vmatmul.mubr.bf16.gmra.mrb[0].mxu0 %v367
    %v403 = vpop.f32.mrb[0].mxu0
    %v404 = vadd.f32 0.0, %v403
    %v405 = vpop.f32.mrb[0].mxu0
    %v406 = vpop.f32.mrb[0].mxu0
    %v407 = vpop.f32.mrb[0].mxu0
    %408 = vdwg.mxu0
    %v413 = vunpack.c.l.b16 %v201
    %v414 = vunpack.c.l.b16 %v202
    %v415 = vunpack.c.l.b16 %v203
    %v416 = vunpack.c.l.b16 %v204
    %v417 = vpack.c.b16 %v414, %v413
    %v418 = vpack.c.b16 %v416, %v415
    %421 = vmatprep.subr.bf16.mxu0 0
    %422 = vmatpush1.bf16.msra.mxu0 %v417
    %423 = vmatprep.subr.bf16.mxu0 0
    %424 = vmatpush1.bf16.msra.mxu0 %v418
    %425 = vmatprep.subr.bf16.mxu0 0
    %426 = vmatpush1.bf16.msra.mxu0 0
    %427 = vmatprep.subr.bf16.mxu0 0
    %428 = vmatpush1.bf16.msra.mxu0 0
    %429 = vmatprep.subr.bf16.mxu0 0
    %430 = vmatpush1.bf16.msra.mxu0 0
    %431 = vmatprep.subr.bf16.mxu0 0
    %432 = vmatpush1.bf16.msra.mxu0 0
    %433 = vmatprep.subr.bf16.mxu0 0
    %434 = vmatpush1.bf16.msra.mxu0 0
    %435 = vmatprep.subr.bf16.mxu0 0
    %436 = vmatpush1.bf16.msra.mxu0 0
    %437 = vmatprep.subr.bf16.mxu0 0
    %438 = vmatpush1.bf16.msra.mxu0 0
    %439 = vmatprep.subr.bf16.mxu0 0
    %440 = vmatpush1.bf16.msra.mxu0 0
    %441 = vmatprep.subr.bf16.mxu0 0
    %442 = vmatpush1.bf16.msra.mxu0 0
    %443 = vmatprep.subr.bf16.mxu0 0
    %444 = vmatpush1.bf16.msra.mxu0 0
    %445 = vmatprep.subr.bf16.mxu0 0
    %446 = vmatpush1.bf16.msra.mxu0 0
    %447 = vmatprep.subr.bf16.mxu0 0
    %448 = vmatpush1.bf16.msra.mxu0 0
    %449 = vmatprep.subr.bf16.mxu0 0
    %450 = vmatpush1.bf16.msra.mxu0 0
    %451 = vmatprep.subr.bf16.mxu0 0
    %452 = vmatpush1.bf16.msra.mxu0 0
    %453 = vmatprep.mubr.bf16.mxu0 0
    %454 = vmatmul.mubr.bf16.gmra.mrb[0].mxu0 %v307
    %v455 = vpop.f32.mrb[0].mxu0
    %v456 = vadd.f32 %v404, %v455
    %v457 = vpop.f32.mrb[0].mxu0
    %v458 = vpop.f32.mrb[0].mxu0
    %v459 = vpop.f32.mrb[0].mxu0
    %460 = vdwg.mxu0
    %v462 = vlaneseq
    %v463 = vshrl.u32 %v462, 7
    %v464 = vsub.s32 0, %v463
    %v465 = vrot.slane %v209, %v464
    %v467 = vadd.f32 %v456, %v465
    %v469 = vrot.slane %v352, 2
    %v472 = vrot.slane %v467, 6
    %v474 = vsel %vm178, %v469, %v472
    %v476 = vrot.slane %v215, 6
    %477 = vrot.lane.b32.xlu0 %v476, 32
    %v478 = vpop.permute.xlu0 %477
    %v480 = vsel %vm178, %v295, %v478
    %v481 = vxor.u32 %v474, 2147483648
    %v482 = vmul.f32 %v481, 1.442695
    %v483 = vpow.pop %v482
    %v484 = vadd.f32 %v483, 1.0
    %v485 = vrcp.pop %v484
    %v486 = vmul.f32 1.0, %v485
    %v487 = vtanh.pop %v474
    %v488 = vmul.f32 %v486, %v480
    %490 = vrot.lane.b32.xlu0 %v487, 64
    %v491 = vpop.permute.xlu0 %490
    %v493 = vmul.f32 %v486, %v491
    %495 = vrot.lane.b32.xlu0 %v493, 32
    %v496 = vpop.permute.xlu0 %495
    %v498 = vadd.f32 %v488, %v496
    %v499 = vtanh.pop %v498
    %501 = vrot.lane.b32.xlu0 %v499, 64
    %v502 = vpop.permute.xlu0 %501
    %v504 = vmul.f32 %v486, %v502
    %v505 = vpack.c.bf16 %v504, %v504
    %507 = vrot.lane.b32.xlu0 %v505, 32
    %v508 = vpop.permute.xlu0 %507
    %v510 = vsel %vm229, %v508, 0
    %512 = vmatprep.subr.bf16.mxu0 0
    %513 = vmatpush1.bf16.msra.mxu0 %v225
    %514 = vmatprep.subr.bf16.mxu0 0
    %515 = vmatpush1.bf16.msra.mxu0 %v226
    %516 = vmatprep.subr.bf16.mxu0 0
    %517 = vmatpush1.bf16.msra.mxu0 0
    %518 = vmatprep.subr.bf16.mxu0 0
    %519 = vmatpush1.bf16.msra.mxu0 0
    %520 = vmatprep.subr.bf16.mxu0 0
    %521 = vmatpush1.bf16.msra.mxu0 0
    %522 = vmatprep.subr.bf16.mxu0 0
    %523 = vmatpush1.bf16.msra.mxu0 0
    %524 = vmatprep.subr.bf16.mxu0 0
    %525 = vmatpush1.bf16.msra.mxu0 0
    %526 = vmatprep.subr.bf16.mxu0 0
    %527 = vmatpush1.bf16.msra.mxu0 0
    %528 = vmatprep.subr.bf16.mxu0 0
    %529 = vmatpush1.bf16.msra.mxu0 0
    %530 = vmatprep.subr.bf16.mxu0 0
    %531 = vmatpush1.bf16.msra.mxu0 0
    %532 = vmatprep.subr.bf16.mxu0 0
    %533 = vmatpush1.bf16.msra.mxu0 0
    %534 = vmatprep.subr.bf16.mxu0 0
    %535 = vmatpush1.bf16.msra.mxu0 0
    %536 = vmatprep.subr.bf16.mxu0 0
    %537 = vmatpush1.bf16.msra.mxu0 0
    %538 = vmatprep.subr.bf16.mxu0 0
    %539 = vmatpush1.bf16.msra.mxu0 0
    %540 = vmatprep.subr.bf16.mxu0 0
    %541 = vmatpush1.bf16.msra.mxu0 0
    %542 = vmatprep.subr.bf16.mxu0 0
    %543 = vmatpush1.bf16.msra.mxu0 0
    %544 = vmatprep.mubr.bf16.mxu0 0
    %545 = vmatmul.mubr.bf16.gmra.mrb[0].mxu0 %v510
    %v546 = vpop.f32.mrb[0].mxu0
    %v547 = vadd.f32 0.0, %v546
    %v548 = vpop.f32.mrb[0].mxu0
    %v549 = vpop.f32.mrb[0].mxu0
    %v550 = vpop.f32.mrb[0].mxu0
    %551 = vdwg.mxu0
    %v553 = vrot.slane %v547, 4
    %v555 = vadd.f32 %v189, %v553
    %v556 = vrot.slane %v505, 1
    %557 = vrot.lane.b32.xlu0 %v556, 32
    %v558 = vpop.permute.xlu0 %557
    %v560 = vsel %vm229, %v558, 0
    %562 = vmatprep.subr.bf16.mxu0 0
    %563 = vmatpush1.bf16.msra.mxu0 %v362
    %564 = vmatprep.subr.bf16.mxu0 0
    %565 = vmatpush1.bf16.msra.mxu0 %v363
    %566 = vmatprep.subr.bf16.mxu0 0
    %567 = vmatpush1.bf16.msra.mxu0 0
    %568 = vmatprep.subr.bf16.mxu0 0
    %569 = vmatpush1.bf16.msra.mxu0 0
    %570 = vmatprep.subr.bf16.mxu0 0
    %571 = vmatpush1.bf16.msra.mxu0 0
    %572 = vmatprep.subr.bf16.mxu0 0
    %573 = vmatpush1.bf16.msra.mxu0 0
    %574 = vmatprep.subr.bf16.mxu0 0
    %575 = vmatpush1.bf16.msra.mxu0 0
    %576 = vmatprep.subr.bf16.mxu0 0
    %577 = vmatpush1.bf16.msra.mxu0 0
    %578 = vmatprep.subr.bf16.mxu0 0
    %579 = vmatpush1.bf16.msra.mxu0 0
    %580 = vmatprep.subr.bf16.mxu0 0
    %581 = vmatpush1.bf16.msra.mxu0 0
    %582 = vmatprep.subr.bf16.mxu0 0
    %583 = vmatpush1.bf16.msra.mxu0 0
    %584 = vmatprep.subr.bf16.mxu0 0
    %585 = vmatpush1.bf16.msra.mxu0 0
    %586 = vmatprep.subr.bf16.mxu0 0
    %587 = vmatpush1.bf16.msra.mxu0 0
    %588 = vmatprep.subr.bf16.mxu0 0
    %589 = vmatpush1.bf16.msra.mxu0 0
    %590 = vmatprep.subr.bf16.mxu0 0
    %591 = vmatpush1.bf16.msra.mxu0 0
    %592 = vmatprep.subr.bf16.mxu0 0
    %593 = vmatpush1.bf16.msra.mxu0 0
    %594 = vmatprep.mubr.bf16.mxu0 0
    %595 = vmatmul.mubr.bf16.gmra.mrb[0].mxu0 %v560
    %v596 = vpop.f32.mrb[0].mxu0
    %v597 = vadd.f32 0.0, %v596
    %v598 = vpop.f32.mrb[0].mxu0
    %v599 = vpop.f32.mrb[0].mxu0
    %v600 = vpop.f32.mrb[0].mxu0
    %601 = vdwg.mxu0
    %602 = vmatprep.subr.bf16.mxu0 0
    %603 = vmatpush1.bf16.msra.mxu0 %v417
    %604 = vmatprep.subr.bf16.mxu0 0
    %605 = vmatpush1.bf16.msra.mxu0 %v418
    %606 = vmatprep.subr.bf16.mxu0 0
    %607 = vmatpush1.bf16.msra.mxu0 0
    %608 = vmatprep.subr.bf16.mxu0 0
    %609 = vmatpush1.bf16.msra.mxu0 0
    %610 = vmatprep.subr.bf16.mxu0 0
    %611 = vmatpush1.bf16.msra.mxu0 0
    %612 = vmatprep.subr.bf16.mxu0 0
    %613 = vmatpush1.bf16.msra.mxu0 0
    %614 = vmatprep.subr.bf16.mxu0 0
    %615 = vmatpush1.bf16.msra.mxu0 0
    %616 = vmatprep.subr.bf16.mxu0 0
    %617 = vmatpush1.bf16.msra.mxu0 0
    %618 = vmatprep.subr.bf16.mxu0 0
    %619 = vmatpush1.bf16.msra.mxu0 0
    %620 = vmatprep.subr.bf16.mxu0 0
    %621 = vmatpush1.bf16.msra.mxu0 0
    %622 = vmatprep.subr.bf16.mxu0 0
    %623 = vmatpush1.bf16.msra.mxu0 0
    %624 = vmatprep.subr.bf16.mxu0 0
    %625 = vmatpush1.bf16.msra.mxu0 0
    %626 = vmatprep.subr.bf16.mxu0 0
    %627 = vmatpush1.bf16.msra.mxu0 0
    %628 = vmatprep.subr.bf16.mxu0 0
    %629 = vmatpush1.bf16.msra.mxu0 0
    %630 = vmatprep.subr.bf16.mxu0 0
    %631 = vmatpush1.bf16.msra.mxu0 0
    %632 = vmatprep.subr.bf16.mxu0 0
    %633 = vmatpush1.bf16.msra.mxu0 0
    %634 = vmatprep.mubr.bf16.mxu0 0
    %635 = vmatmul.mubr.bf16.gmra.mrb[0].mxu0 %v510
    %v636 = vpop.f32.mrb[0].mxu0
    %v637 = vadd.f32 %v597, %v636
    %v638 = vpop.f32.mrb[0].mxu0
    %v639 = vpop.f32.mrb[0].mxu0
    %v640 = vpop.f32.mrb[0].mxu0
    %641 = vdwg.mxu0
    %v642 = vadd.f32 %v637, %v465
    %v644 = vrot.slane %v555, 4
    %v647 = vrot.slane %v642, 6
    %v649 = vsel %vm178, %v644, %v647
    %v650 = vxor.u32 %v649, 2147483648
    %v651 = vmul.f32 %v650, 1.442695
    %v652 = vpow.pop %v651
    %v653 = vadd.f32 %v652, 1.0
    %v654 = vrcp.pop %v653
    %v655 = vmul.f32 1.0, %v654
    %v656 = vtanh.pop %v649
    %v657 = vmul.f32 %v655, %v498
    %659 = vrot.lane.b32.xlu0 %v656, 64
    %v660 = vpop.permute.xlu0 %659
    %v662 = vmul.f32 %v655, %v660
    %664 = vrot.lane.b32.xlu0 %v662, 32
    %v665 = vpop.permute.xlu0 %664
    %v667 = vadd.f32 %v657, %v665
    %v668 = vtanh.pop %v667
    %670 = vrot.lane.b32.xlu0 %v668, 64
    %v671 = vpop.permute.xlu0 %670
    %v673 = vmul.f32 %v655, %v671
    %v674 = vpack.c.bf16 %v673, %v673
    %676 = vrot.lane.b32.xlu0 %v674, 32
    %v677 = vpop.permute.xlu0 %676
    %v679 = vsel %vm229, %v677, 0
    %681 = vmatprep.subr.bf16.mxu0 0
    %682 = vmatpush1.bf16.msra.mxu0 %v225
    %683 = vmatprep.subr.bf16.mxu0 0
    %684 = vmatpush1.bf16.msra.mxu0 %v226
    %685 = vmatprep.subr.bf16.mxu0 0
    %686 = vmatpush1.bf16.msra.mxu0 0
    %687 = vmatprep.subr.bf16.mxu0 0
    %688 = vmatpush1.bf16.msra.mxu0 0
    %689 = vmatprep.subr.bf16.mxu0 0
    %690 = vmatpush1.bf16.msra.mxu0 0
    %691 = vmatprep.subr.bf16.mxu0 0
    %692 = vmatpush1.bf16.msra.mxu0 0
    %693 = vmatprep.subr.bf16.mxu0 0
    %694 = vmatpush1.bf16.msra.mxu0 0
    %695 = vmatprep.subr.bf16.mxu0 0
    %696 = vmatpush1.bf16.msra.mxu0 0
    %697 = vmatprep.subr.bf16.mxu0 0
    %698 = vmatpush1.bf16.msra.mxu0 0
    %699 = vmatprep.subr.bf16.mxu0 0
    %700 = vmatpush1.bf16.msra.mxu0 0
    %701 = vmatprep.subr.bf16.mxu0 0
    %702 = vmatpush1.bf16.msra.mxu0 0
    %703 = vmatprep.subr.bf16.mxu0 0
    %704 = vmatpush1.bf16.msra.mxu0 0
    %705 = vmatprep.subr.bf16.mxu0 0
    %706 = vmatpush1.bf16.msra.mxu0 0
    %707 = vmatprep.subr.bf16.mxu0 0
    %708 = vmatpush1.bf16.msra.mxu0 0
    %709 = vmatprep.subr.bf16.mxu0 0
    %710 = vmatpush1.bf16.msra.mxu0 0
    %711 = vmatprep.subr.bf16.mxu0 0
    %712 = vmatpush1.bf16.msra.mxu0 0
    %713 = vmatprep.mubr.bf16.mxu0 0
    %714 = vmatmul.mubr.bf16.gmra.mrb[0].mxu0 %v679
    %v715 = vpop.f32.mrb[0].mxu0
    %v716 = vadd.f32 0.0, %v715
    %v717 = vpop.f32.mrb[0].mxu0
    %v718 = vpop.f32.mrb[0].mxu0
    %v719 = vpop.f32.mrb[0].mxu0
    %720 = vdwg.mxu0
    %v722 = vrot.slane %v716, 2
    %v724 = vadd.f32 %v189, %v722
    %v725 = vrot.slane %v674, 1
    %726 = vrot.lane.b32.xlu0 %v725, 32
    %v727 = vpop.permute.xlu0 %726
    %v729 = vsel %vm229, %v727, 0
    %731 = vmatprep.subr.bf16.mxu0 0
    %732 = vmatpush1.bf16.msra.mxu0 %v362
    %733 = vmatprep.subr.bf16.mxu0 0
    %734 = vmatpush1.bf16.msra.mxu0 %v363
    %735 = vmatprep.subr.bf16.mxu0 0
    %736 = vmatpush1.bf16.msra.mxu0 0
    %737 = vmatprep.subr.bf16.mxu0 0
    %738 = vmatpush1.bf16.msra.mxu0 0
    %739 = vmatprep.subr.bf16.mxu0 0
    %740 = vmatpush1.bf16.msra.mxu0 0
    %741 = vmatprep.subr.bf16.mxu0 0
    %742 = vmatpush1.bf16.msra.mxu0 0
    %743 = vmatprep.subr.bf16.mxu0 0
    %744 = vmatpush1.bf16.msra.mxu0 0
    %745 = vmatprep.subr.bf16.mxu0 0
    %746 = vmatpush1.bf16.msra.mxu0 0
    %747 = vmatprep.subr.bf16.mxu0 0
    %748 = vmatpush1.bf16.msra.mxu0 0
    %749 = vmatprep.subr.bf16.mxu0 0
    %750 = vmatpush1.bf16.msra.mxu0 0
    %751 = vmatprep.subr.bf16.mxu0 0
    %752 = vmatpush1.bf16.msra.mxu0 0
    %753 = vmatprep.subr.bf16.mxu0 0
    %754 = vmatpush1.bf16.msra.mxu0 0
    %755 = vmatprep.subr.bf16.mxu0 0
    %756 = vmatpush1.bf16.msra.mxu0 0
    %757 = vmatprep.subr.bf16.mxu0 0
    %758 = vmatpush1.bf16.msra.mxu0 0
    %759 = vmatprep.subr.bf16.mxu0 0
    %760 = vmatpush1.bf16.msra.mxu0 0
    %761 = vmatprep.subr.bf16.mxu0 0
    %762 = vmatpush1.bf16.msra.mxu0 0
    %763 = vmatprep.mubr.bf16.mxu0 0
    %764 = vmatmul.mubr.bf16.gmra.mrb[0].mxu0 %v729
    %v765 = vpop.f32.mrb[0].mxu0
    %v766 = vadd.f32 0.0, %v765
    %v767 = vpop.f32.mrb[0].mxu0
    %v768 = vpop.f32.mrb[0].mxu0
    %v769 = vpop.f32.mrb[0].mxu0
    %770 = vdwg.mxu0
    %771 = vmatprep.subr.bf16.mxu0 0
    %772 = vmatpush1.bf16.msra.mxu0 %v417
    %773 = vmatprep.subr.bf16.mxu0 0
    %774 = vmatpush1.bf16.msra.mxu0 %v418
    %775 = vmatprep.subr.bf16.mxu0 0
    %776 = vmatpush1.bf16.msra.mxu0 0
    %777 = vmatprep.subr.bf16.mxu0 0
    %778 = vmatpush1.bf16.msra.mxu0 0
    %779 = vmatprep.subr.bf16.mxu0 0
    %780 = vmatpush1.bf16.msra.mxu0 0
    %781 = vmatprep.subr.bf16.mxu0 0
    %782 = vmatpush1.bf16.msra.mxu0 0
    %783 = vmatprep.subr.bf16.mxu0 0
    %784 = vmatpush1.bf16.msra.mxu0 0
    %785 = vmatprep.subr.bf16.mxu0 0
    %786 = vmatpush1.bf16.msra.mxu0 0
    %787 = vmatprep.subr.bf16.mxu0 0
    %788 = vmatpush1.bf16.msra.mxu0 0
    %789 = vmatprep.subr.bf16.mxu0 0
    %790 = vmatpush1.bf16.msra.mxu0 0
    %791 = vmatprep.subr.bf16.mxu0 0
    %792 = vmatpush1.bf16.msra.mxu0 0
    %793 = vmatprep.subr.bf16.mxu0 0
    %794 = vmatpush1.bf16.msra.mxu0 0
    %795 = vmatprep.subr.bf16.mxu0 0
    %796 = vmatpush1.bf16.msra.mxu0 0
    %797 = vmatprep.subr.bf16.mxu0 0
    %798 = vmatpush1.bf16.msra.mxu0 0
    %799 = vmatprep.subr.bf16.mxu0 0
    %800 = vmatpush1.bf16.msra.mxu0 0
    %801 = vmatprep.subr.bf16.mxu0 0
    %802 = vmatpush1.bf16.msra.mxu0 0
    %803 = vmatprep.mubr.bf16.mxu0 0
    %804 = vmatmul.mubr.bf16.gmra.mrb[0].mxu0 %v679
    %v805 = vpop.f32.mrb[0].mxu0
    %v806 = vadd.f32 %v766, %v805
    %v807 = vpop.f32.mrb[0].mxu0
    %v808 = vpop.f32.mrb[0].mxu0
    %v809 = vpop.f32.mrb[0].mxu0
    %810 = vdwg.mxu0
    %v811 = vadd.f32 %v806, %v465
    %v813 = vrot.slane %v724, 6
    %v816 = vrot.slane %v811, 6
    %v818 = vsel %vm178, %v813, %v816
    %v819 = vxor.u32 %v818, 2147483648
    %v820 = vmul.f32 %v819, 1.442695
    %v821 = vpow.pop %v820
    %v822 = vadd.f32 %v821, 1.0
    %v823 = vrcp.pop %v822
    %v824 = vmul.f32 1.0, %v823
    %v825 = vtanh.pop %v818
    %v826 = vmul.f32 %v824, %v667
    %828 = vrot.lane.b32.xlu0 %v825, 64
    %v829 = vpop.permute.xlu0 %828
    %v831 = vmul.f32 %v824, %v829
    %833 = vrot.lane.b32.xlu0 %v831, 32
    %v834 = vpop.permute.xlu0 %833
    %v836 = vadd.f32 %v826, %v834
    %v837 = vtanh.pop %v836
    %839 = vrot.lane.b32.xlu0 %v837, 64
    %v840 = vpop.permute.xlu0 %839
    %v842 = vmul.f32 %v824, %v840
    %v843 = vpack.c.bf16 %v842, %v842
    %845 = vrot.lane.b32.xlu0 %v843, 32
    %v846 = vpop.permute.xlu0 %845
    %v848 = vsel %vm229, %v846, 0
    %850 = vmatprep.subr.bf16.mxu0 0
    %851 = vmatpush1.bf16.msra.mxu0 %v225
    %852 = vmatprep.subr.bf16.mxu0 0
    %853 = vmatpush1.bf16.msra.mxu0 %v226
    %854 = vmatprep.subr.bf16.mxu0 0
    %855 = vmatpush1.bf16.msra.mxu0 0
    %856 = vmatprep.subr.bf16.mxu0 0
    %857 = vmatpush1.bf16.msra.mxu0 0
    %858 = vmatprep.subr.bf16.mxu0 0
    %859 = vmatpush1.bf16.msra.mxu0 0
    %860 = vmatprep.subr.bf16.mxu0 0
    %861 = vmatpush1.bf16.msra.mxu0 0
    %862 = vmatprep.subr.bf16.mxu0 0
    %863 = vmatpush1.bf16.msra.mxu0 0
    %864 = vmatprep.subr.bf16.mxu0 0
    %865 = vmatpush1.bf16.msra.mxu0 0
    %866 = vmatprep.subr.bf16.mxu0 0
    %867 = vmatpush1.bf16.msra.mxu0 0
    %868 = vmatprep.subr.bf16.mxu0 0
    %869 = vmatpush1.bf16.msra.mxu0 0
    %870 = vmatprep.subr.bf16.mxu0 0
    %871 = vmatpush1.bf16.msra.mxu0 0
    %872 = vmatprep.subr.bf16.mxu0 0
    %873 = vmatpush1.bf16.msra.mxu0 0
    %874 = vmatprep.subr.bf16.mxu0 0
    %875 = vmatpush1.bf16.msra.mxu0 0
    %876 = vmatprep.subr.bf16.mxu0 0
    %877 = vmatpush1.bf16.msra.mxu0 0
    %878 = vmatprep.subr.bf16.mxu0 0
    %879 = vmatpush1.bf16.msra.mxu0 0
    %880 = vmatprep.subr.bf16.mxu0 0
    %881 = vmatpush1.bf16.msra.mxu0 0
    %882 = vmatprep.mubr.bf16.mxu0 0
    %883 = vmatmul.mubr.bf16.gmra.mrb[0].mxu0 %v848
    %v884 = vpop.f32.mrb[0].mxu0
    %v885 = vadd.f32 0.0, %v884
    %v886 = vpop.f32.mrb[0].mxu0
    %v887 = vpop.f32.mrb[0].mxu0
    %v888 = vpop.f32.mrb[0].mxu0
    %889 = vdwg.mxu0
    %v890 = vadd.f32 %v196, %v885
    %v891 = vrot.slane %v843, 1
    %892 = vrot.lane.b32.xlu0 %v891, 32
    %v893 = vpop.permute.xlu0 %892
    %v895 = vsel %vm229, %v893, 0
    %897 = vmatprep.subr.bf16.mxu0 0
    %898 = vmatpush1.bf16.msra.mxu0 %v362
    %899 = vmatprep.subr.bf16.mxu0 0
    %900 = vmatpush1.bf16.msra.mxu0 %v363
    %901 = vmatprep.subr.bf16.mxu0 0
    %902 = vmatpush1.bf16.msra.mxu0 0
    %903 = vmatprep.subr.bf16.mxu0 0
    %904 = vmatpush1.bf16.msra.mxu0 0
    %905 = vmatprep.subr.bf16.mxu0 0
    %906 = vmatpush1.bf16.msra.mxu0 0
    %907 = vmatprep.subr.bf16.mxu0 0
    %908 = vmatpush1.bf16.msra.mxu0 0
    %909 = vmatprep.subr.bf16.mxu0 0
    %910 = vmatpush1.bf16.msra.mxu0 0
    %911 = vmatprep.subr.bf16.mxu0 0
    %912 = vmatpush1.bf16.msra.mxu0 0
    %913 = vmatprep.subr.bf16.mxu0 0
    %914 = vmatpush1.bf16.msra.mxu0 0
    %915 = vmatprep.subr.bf16.mxu0 0
    %916 = vmatpush1.bf16.msra.mxu0 0
    %917 = vmatprep.subr.bf16.mxu0 0
    %918 = vmatpush1.bf16.msra.mxu0 0
    %919 = vmatprep.subr.bf16.mxu0 0
    %920 = vmatpush1.bf16.msra.mxu0 0
    %921 = vmatprep.subr.bf16.mxu0 0
    %922 = vmatpush1.bf16.msra.mxu0 0
    %923 = vmatprep.subr.bf16.mxu0 0
    %924 = vmatpush1.bf16.msra.mxu0 0
    %925 = vmatprep.subr.bf16.mxu0 0
    %926 = vmatpush1.bf16.msra.mxu0 0
    %927 = vmatprep.subr.bf16.mxu0 0
    %928 = vmatpush1.bf16.msra.mxu0 0
    %929 = vmatprep.mubr.bf16.mxu0 0
    %930 = vmatmul.mubr.bf16.gmra.mrb[0].mxu0 %v895
    %v931 = vpop.f32.mrb[0].mxu0
    %v932 = vadd.f32 0.0, %v931
    %v933 = vpop.f32.mrb[0].mxu0
    %v934 = vpop.f32.mrb[0].mxu0
    %v935 = vpop.f32.mrb[0].mxu0
    %936 = vdwg.mxu0
    %937 = vmatprep.subr.bf16.mxu0 0
    %938 = vmatpush1.bf16.msra.mxu0 %v417
    %939 = vmatprep.subr.bf16.mxu0 0
    %940 = vmatpush1.bf16.msra.mxu0 %v418
    %941 = vmatprep.subr.bf16.mxu0 0
    %942 = vmatpush1.bf16.msra.mxu0 0
    %943 = vmatprep.subr.bf16.mxu0 0
    %944 = vmatpush1.bf16.msra.mxu0 0
    %945 = vmatprep.subr.bf16.mxu0 0
    %946 = vmatpush1.bf16.msra.mxu0 0
    %947 = vmatprep.subr.bf16.mxu0 0
    %948 = vmatpush1.bf16.msra.mxu0 0
    %949 = vmatprep.subr.bf16.mxu0 0
    %950 = vmatpush1.bf16.msra.mxu0 0
    %951 = vmatprep.subr.bf16.mxu0 0
    %952 = vmatpush1.bf16.msra.mxu0 0
    %953 = vmatprep.subr.bf16.mxu0 0
    %954 = vmatpush1.bf16.msra.mxu0 0
    %955 = vmatprep.subr.bf16.mxu0 0
    %956 = vmatpush1.bf16.msra.mxu0 0
    %957 = vmatprep.subr.bf16.mxu0 0
    %958 = vmatpush1.bf16.msra.mxu0 0
    %959 = vmatprep.subr.bf16.mxu0 0
    %960 = vmatpush1.bf16.msra.mxu0 0
    %961 = vmatprep.subr.bf16.mxu0 0
    %962 = vmatpush1.bf16.msra.mxu0 0
    %963 = vmatprep.subr.bf16.mxu0 0
    %964 = vmatpush1.bf16.msra.mxu0 0
    %965 = vmatprep.subr.bf16.mxu0 0
    %966 = vmatpush1.bf16.msra.mxu0 0
    %967 = vmatprep.subr.bf16.mxu0 0
    %968 = vmatpush1.bf16.msra.mxu0 0
    %969 = vmatprep.mubr.bf16.mxu0 0
    %970 = vmatmul.mubr.bf16.gmra.mrb[0].mxu0 %v848
    %v971 = vpop.f32.mrb[0].mxu0
    %v972 = vadd.f32 %v932, %v971
    %v973 = vpop.f32.mrb[0].mxu0
    %v974 = vpop.f32.mrb[0].mxu0
    %v975 = vpop.f32.mrb[0].mxu0
    %976 = vdwg.mxu0
    %v977 = vadd.f32 %v972, %v465
    %v979 = vrot.slane %v977, 6
    %v981 = vsel %vm178, %v890, %v979
    %v982 = vxor.u32 %v981, 2147483648
    %v983 = vmul.f32 %v982, 1.442695
    %v984 = vpow.pop %v983
    %v985 = vadd.f32 %v984, 1.0
    %v986 = vrcp.pop %v985
    %v987 = vmul.f32 1.0, %v986
    %v988 = vtanh.pop %v981
    %v989 = vmul.f32 %v987, %v836
    %991 = vrot.lane.b32.xlu0 %v988, 64
    %v992 = vpop.permute.xlu0 %991
    %v994 = vmul.f32 %v987, %v992
    %996 = vrot.lane.b32.xlu0 %v994, 32
    %v997 = vpop.permute.xlu0 %996
    %v999 = vadd.f32 %v989, %v997
    %v1000 = vtanh.pop %v999
    %1002 = vrot.lane.b32.xlu0 %v1000, 64
    %v1003 = vpop.permute.xlu0 %1002
    %v1005 = vmul.f32 %v987, %v1003
    %v1006 = vpack.c.bf16 %v1005, %v1005
    %1008 = vrot.lane.b32.xlu0 %v1006, 32
    %v1009 = vpop.permute.xlu0 %1008
    %v1011 = vsel %vm229, %v1009, 0
    %1013 = vmatprep.subr.bf16.mxu0 0
    %1014 = vmatpush1.bf16.msra.mxu0 %v225
    %1015 = vmatprep.subr.bf16.mxu0 0
    %1016 = vmatpush1.bf16.msra.mxu0 %v226
    %1017 = vmatprep.subr.bf16.mxu0 0
    %1018 = vmatpush1.bf16.msra.mxu0 0
    %1019 = vmatprep.subr.bf16.mxu0 0
    %1020 = vmatpush1.bf16.msra.mxu0 0
    %1021 = vmatprep.subr.bf16.mxu0 0
    %1022 = vmatpush1.bf16.msra.mxu0 0
    %1023 = vmatprep.subr.bf16.mxu0 0
    %1024 = vmatpush1.bf16.msra.mxu0 0
    %1025 = vmatprep.subr.bf16.mxu0 0
    %1026 = vmatpush1.bf16.msra.mxu0 0
    %1027 = vmatprep.subr.bf16.mxu0 0
    %1028 = vmatpush1.bf16.msra.mxu0 0
    %1029 = vmatprep.subr.bf16.mxu0 0
    %1030 = vmatpush1.bf16.msra.mxu0 0
    %1031 = vmatprep.subr.bf16.mxu0 0
    %1032 = vmatpush1.bf16.msra.mxu0 0
    %1033 = vmatprep.subr.bf16.mxu0 0
    %1034 = vmatpush1.bf16.msra.mxu0 0
    %1035 = vmatprep.subr.bf16.mxu0 0
    %1036 = vmatpush1.bf16.msra.mxu0 0
    %1037 = vmatprep.subr.bf16.mxu0 0
    %1038 = vmatpush1.bf16.msra.mxu0 0
    %1039 = vmatprep.subr.bf16.mxu0 0
    %1040 = vmatpush1.bf16.msra.mxu0 0
    %1041 = vmatprep.subr.bf16.mxu0 0
    %1042 = vmatpush1.bf16.msra.mxu0 0
    %1043 = vmatprep.subr.bf16.mxu0 0
    %1044 = vmatpush1.bf16.msra.mxu0 0
    %1045 = vmatprep.mubr.bf16.mxu0 0
    %1046 = vmatmul.mubr.bf16.gmra.mrb[0].mxu0 %v1011
    %v1047 = vpop.f32.mrb[0].mxu0
    %v1048 = vadd.f32 0.0, %v1047
    %v1049 = vpop.f32.mrb[0].mxu0
    %v1050 = vpop.f32.mrb[0].mxu0
    %v1051 = vpop.f32.mrb[0].mxu0
    %1052 = vdwg.mxu0
    %v1054 = vrot.slane %v1048, 6
    %v1056 = vadd.f32 %v196, %v1054
    %v1057 = vrot.slane %v1006, 1
    %1058 = vrot.lane.b32.xlu0 %v1057, 32
    %v1059 = vpop.permute.xlu0 %1058
    %v1061 = vsel %vm229, %v1059, 0
    %1063 = vmatprep.subr.bf16.mxu0 0
    %1064 = vmatpush1.bf16.msra.mxu0 %v362
    %1065 = vmatprep.subr.bf16.mxu0 0
    %1066 = vmatpush1.bf16.msra.mxu0 %v363
    %1067 = vmatprep.subr.bf16.mxu0 0
    %1068 = vmatpush1.bf16.msra.mxu0 0
    %1069 = vmatprep.subr.bf16.mxu0 0
    %1070 = vmatpush1.bf16.msra.mxu0 0
    %1071 = vmatprep.subr.bf16.mxu0 0
    %1072 = vmatpush1.bf16.msra.mxu0 0
    %1073 = vmatprep.subr.bf16.mxu0 0
    %1074 = vmatpush1.bf16.msra.mxu0 0
    %1075 = vmatprep.subr.bf16.mxu0 0
    %1076 = vmatpush1.bf16.msra.mxu0 0
    %1077 = vmatprep.subr.bf16.mxu0 0
    %1078 = vmatpush1.bf16.msra.mxu0 0
    %1079 = vmatprep.subr.bf16.mxu0 0
    %1080 = vmatpush1.bf16.msra.mxu0 0
    %1081 = vmatprep.subr.bf16.mxu0 0
    %1082 = vmatpush1.bf16.msra.mxu0 0
    %1083 = vmatprep.subr.bf16.mxu0 0
    %1084 = vmatpush1.bf16.msra.mxu0 0
    %1085 = vmatprep.subr.bf16.mxu0 0
    %1086 = vmatpush1.bf16.msra.mxu0 0
    %1087 = vmatprep.subr.bf16.mxu0 0
    %1088 = vmatpush1.bf16.msra.mxu0 0
    %1089 = vmatprep.subr.bf16.mxu0 0
    %1090 = vmatpush1.bf16.msra.mxu0 0
    %1091 = vmatprep.subr.bf16.mxu0 0
    %1092 = vmatpush1.bf16.msra.mxu0 0
    %1093 = vmatprep.subr.bf16.mxu0 0
    %1094 = vmatpush1.bf16.msra.mxu0 0
    %1095 = vmatprep.mubr.bf16.mxu0 0
    %1096 = vmatmul.mubr.bf16.gmra.mrb[0].mxu0 %v1061
    %v1097 = vpop.f32.mrb[0].mxu0
    %v1098 = vadd.f32 0.0, %v1097
    %v1099 = vpop.f32.mrb[0].mxu0
    %v1100 = vpop.f32.mrb[0].mxu0
    %v1101 = vpop.f32.mrb[0].mxu0
    %1102 = vdwg.mxu0
    %1103 = vmatprep.subr.bf16.mxu0 0
    %1104 = vmatpush1.bf16.msra.mxu0 %v417
    %1105 = vmatprep.subr.bf16.mxu0 0
    %1106 = vmatpush1.bf16.msra.mxu0 %v418
    %1107 = vmatprep.subr.bf16.mxu0 0
    %1108 = vmatpush1.bf16.msra.mxu0 0
    %1109 = vmatprep.subr.bf16.mxu0 0
    %1110 = vmatpush1.bf16.msra.mxu0 0
    %1111 = vmatprep.subr.bf16.mxu0 0
    %1112 = vmatpush1.bf16.msra.mxu0 0
    %1113 = vmatprep.subr.bf16.mxu0 0
    %1114 = vmatpush1.bf16.msra.mxu0 0
    %1115 = vmatprep.subr.bf16.mxu0 0
    %1116 = vmatpush1.bf16.msra.mxu0 0
    %1117 = vmatprep.subr.bf16.mxu0 0
    %1118 = vmatpush1.bf16.msra.mxu0 0
    %1119 = vmatprep.subr.bf16.mxu0 0
    %1120 = vmatpush1.bf16.msra.mxu0 0
    %1121 = vmatprep.subr.bf16.mxu0 0
    %1122 = vmatpush1.bf16.msra.mxu0 0
    %1123 = vmatprep.subr.bf16.mxu0 0
    %1124 = vmatpush1.bf16.msra.mxu0 0
    %1125 = vmatprep.subr.bf16.mxu0 0
    %1126 = vmatpush1.bf16.msra.mxu0 0
    %1127 = vmatprep.subr.bf16.mxu0 0
    %1128 = vmatpush1.bf16.msra.mxu0 0
    %1129 = vmatprep.subr.bf16.mxu0 0
    %1130 = vmatpush1.bf16.msra.mxu0 0
    %1131 = vmatprep.subr.bf16.mxu0 0
    %1132 = vmatpush1.bf16.msra.mxu0 0
    %1133 = vmatprep.subr.bf16.mxu0 0
    %1134 = vmatpush1.bf16.msra.mxu0 0
    %1135 = vmatprep.mubr.bf16.mxu0 0
    %1136 = vmatmul.mubr.bf16.gmra.mrb[0].mxu0 %v1011
    %v1137 = vpop.f32.mrb[0].mxu0
    %v1138 = vadd.f32 %v1098, %v1137
    %v1139 = vpop.f32.mrb[0].mxu0
    %v1140 = vpop.f32.mrb[0].mxu0
    %v1141 = vpop.f32.mrb[0].mxu0
    %1142 = vdwg.mxu0
    %v1143 = vadd.f32 %v1138, %v465
    %v1145 = vrot.slane %v1056, 2
    %v1148 = vrot.slane %v1143, 6
    %v1150 = vsel %vm178, %v1145, %v1148
    %v1151 = vxor.u32 %v1150, 2147483648
    %v1152 = vmul.f32 %v1151, 1.442695
    %v1153 = vpow.pop %v1152
    %v1154 = vadd.f32 %v1153, 1.0
    %v1155 = vrcp.pop %v1154
    %v1156 = vmul.f32 1.0, %v1155
    %v1157 = vtanh.pop %v1150
    %v1158 = vmul.f32 %v1156, %v999
    %1160 = vrot.lane.b32.xlu0 %v1157, 64
    %v1161 = vpop.permute.xlu0 %1160
    %v1163 = vmul.f32 %v1156, %v1161
    %1165 = vrot.lane.b32.xlu0 %v1163, 32
    %v1166 = vpop.permute.xlu0 %1165
    %v1168 = vadd.f32 %v1158, %v1166
    %v1169 = vtanh.pop %v1168
    %1171 = vrot.lane.b32.xlu0 %v1169, 64
    %v1172 = vpop.permute.xlu0 %1171
    %v1174 = vmul.f32 %v1156, %v1172
    %v1175 = vpack.c.bf16 %v1174, %v1174
    %1177 = vrot.lane.b32.xlu0 %v1175, 32
    %v1178 = vpop.permute.xlu0 %1177
    %v1180 = vsel %vm229, %v1178, 0
    %1182 = vmatprep.subr.bf16.mxu0 0
    %1183 = vmatpush1.bf16.msra.mxu0 %v225
    %1184 = vmatprep.subr.bf16.mxu0 0
    %1185 = vmatpush1.bf16.msra.mxu0 %v226
    %1186 = vmatprep.subr.bf16.mxu0 0
    %1187 = vmatpush1.bf16.msra.mxu0 0
    %1188 = vmatprep.subr.bf16.mxu0 0
    %1189 = vmatpush1.bf16.msra.mxu0 0
    %1190 = vmatprep.subr.bf16.mxu0 0
    %1191 = vmatpush1.bf16.msra.mxu0 0
    %1192 = vmatprep.subr.bf16.mxu0 0
    %1193 = vmatpush1.bf16.msra.mxu0 0
    %1194 = vmatprep.subr.bf16.mxu0 0
    %1195 = vmatpush1.bf16.msra.mxu0 0
    %1196 = vmatprep.subr.bf16.mxu0 0
    %1197 = vmatpush1.bf16.msra.mxu0 0
    %1198 = vmatprep.subr.bf16.mxu0 0
    %1199 = vmatpush1.bf16.msra.mxu0 0
    %1200 = vmatprep.subr.bf16.mxu0 0
    %1201 = vmatpush1.bf16.msra.mxu0 0
    %1202 = vmatprep.subr.bf16.mxu0 0
    %1203 = vmatpush1.bf16.msra.mxu0 0
    %1204 = vmatprep.subr.bf16.mxu0 0
    %1205 = vmatpush1.bf16.msra.mxu0 0
    %1206 = vmatprep.subr.bf16.mxu0 0
    %1207 = vmatpush1.bf16.msra.mxu0 0
    %1208 = vmatprep.subr.bf16.mxu0 0
    %1209 = vmatpush1.bf16.msra.mxu0 0
    %1210 = vmatprep.subr.bf16.mxu0 0
    %1211 = vmatpush1.bf16.msra.mxu0 0
    %1212 = vmatprep.subr.bf16.mxu0 0
    %1213 = vmatpush1.bf16.msra.mxu0 0
    %1214 = vmatprep.mubr.bf16.mxu0 0
    %1215 = vmatmul.mubr.bf16.gmra.mrb[0].mxu0 %v1180
    %v1216 = vpop.f32.mrb[0].mxu0
    %v1217 = vadd.f32 0.0, %v1216
    %v1218 = vpop.f32.mrb[0].mxu0
    %v1219 = vpop.f32.mrb[0].mxu0
    %v1220 = vpop.f32.mrb[0].mxu0
    %1221 = vdwg.mxu0
    %v1223 = vrot.slane %v1217, 4
    %v1225 = vadd.f32 %v196, %v1223
    %v1226 = vrot.slane %v1175, 1
    %1227 = vrot.lane.b32.xlu0 %v1226, 32
    %v1228 = vpop.permute.xlu0 %1227
    %v1230 = vsel %vm229, %v1228, 0
    %1232 = vmatprep.subr.bf16.mxu0 0
    %1233 = vmatpush1.bf16.msra.mxu0 %v362
    %1234 = vmatprep.subr.bf16.mxu0 0
    %1235 = vmatpush1.bf16.msra.mxu0 %v363
    %1236 = vmatprep.subr.bf16.mxu0 0
    %1237 = vmatpush1.bf16.msra.mxu0 0
    %1238 = vmatprep.subr.bf16.mxu0 0
    %1239 = vmatpush1.bf16.msra.mxu0 0
    %1240 = vmatprep.subr.bf16.mxu0 0
    %1241 = vmatpush1.bf16.msra.mxu0 0
    %1242 = vmatprep.subr.bf16.mxu0 0
    %1243 = vmatpush1.bf16.msra.mxu0 0
    %1244 = vmatprep.subr.bf16.mxu0 0
    %1245 = vmatpush1.bf16.msra.mxu0 0
    %1246 = vmatprep.subr.bf16.mxu0 0
    %1247 = vmatpush1.bf16.msra.mxu0 0
    %1248 = vmatprep.subr.bf16.mxu0 0
    %1249 = vmatpush1.bf16.msra.mxu0 0
    %1250 = vmatprep.subr.bf16.mxu0 0
    %1251 = vmatpush1.bf16.msra.mxu0 0
    %1252 = vmatprep.subr.bf16.mxu0 0
    %1253 = vmatpush1.bf16.msra.mxu0 0
    %1254 = vmatprep.subr.bf16.mxu0 0
    %1255 = vmatpush1.bf16.msra.mxu0 0
    %1256 = vmatprep.subr.bf16.mxu0 0
    %1257 = vmatpush1.bf16.msra.mxu0 0
    %1258 = vmatprep.subr.bf16.mxu0 0
    %1259 = vmatpush1.bf16.msra.mxu0 0
    %1260 = vmatprep.subr.bf16.mxu0 0
    %1261 = vmatpush1.bf16.msra.mxu0 0
    %1262 = vmatprep.subr.bf16.mxu0 0
    %1263 = vmatpush1.bf16.msra.mxu0 0
    %1264 = vmatprep.mubr.bf16.mxu0 0
    %1265 = vmatmul.mubr.bf16.gmra.mrb[0].mxu0 %v1230
    %v1266 = vpop.f32.mrb[0].mxu0
    %v1267 = vadd.f32 0.0, %v1266
    %v1268 = vpop.f32.mrb[0].mxu0
    %v1269 = vpop.f32.mrb[0].mxu0
    %v1270 = vpop.f32.mrb[0].mxu0
    %1271 = vdwg.mxu0
    %1272 = vmatprep.subr.bf16.mxu0 0
    %1273 = vmatpush1.bf16.msra.mxu0 %v417
    %1274 = vmatprep.subr.bf16.mxu0 0
    %1275 = vmatpush1.bf16.msra.mxu0 %v418
    %1276 = vmatprep.subr.bf16.mxu0 0
    %1277 = vmatpush1.bf16.msra.mxu0 0
    %1278 = vmatprep.subr.bf16.mxu0 0
    %1279 = vmatpush1.bf16.msra.mxu0 0
    %1280 = vmatprep.subr.bf16.mxu0 0
    %1281 = vmatpush1.bf16.msra.mxu0 0
    %1282 = vmatprep.subr.bf16.mxu0 0
    %1283 = vmatpush1.bf16.msra.mxu0 0
    %1284 = vmatprep.subr.bf16.mxu0 0
    %1285 = vmatpush1.bf16.msra.mxu0 0
    %1286 = vmatprep.subr.bf16.mxu0 0
    %1287 = vmatpush1.bf16.msra.mxu0 0
    %1288 = vmatprep.subr.bf16.mxu0 0
    %1289 = vmatpush1.bf16.msra.mxu0 0
    %1290 = vmatprep.subr.bf16.mxu0 0
    %1291 = vmatpush1.bf16.msra.mxu0 0
    %1292 = vmatprep.subr.bf16.mxu0 0
    %1293 = vmatpush1.bf16.msra.mxu0 0
    %1294 = vmatprep.subr.bf16.mxu0 0
    %1295 = vmatpush1.bf16.msra.mxu0 0
    %1296 = vmatprep.subr.bf16.mxu0 0
    %1297 = vmatpush1.bf16.msra.mxu0 0
    %1298 = vmatprep.subr.bf16.mxu0 0
    %1299 = vmatpush1.bf16.msra.mxu0 0
    %1300 = vmatprep.subr.bf16.mxu0 0
    %1301 = vmatpush1.bf16.msra.mxu0 0
    %1302 = vmatprep.subr.bf16.mxu0 0
    %1303 = vmatpush1.bf16.msra.mxu0 0
    %1304 = vmatprep.mubr.bf16.mxu0 0
    %1305 = vmatmul.mubr.bf16.gmra.mrb[0].mxu0 %v1180
    %v1306 = vpop.f32.mrb[0].mxu0
    %v1307 = vadd.f32 %v1267, %v1306
    %v1308 = vpop.f32.mrb[0].mxu0
    %v1309 = vpop.f32.mrb[0].mxu0
    %v1310 = vpop.f32.mrb[0].mxu0
    %1311 = vdwg.mxu0
    %v1312 = vadd.f32 %v1307, %v465
    %v1314 = vrot.slane %v1225, 4
    %v1317 = vrot.slane %v1312, 6
    %v1319 = vsel %vm178, %v1314, %v1317
    %v1320 = vxor.u32 %v1319, 2147483648
    %v1321 = vmul.f32 %v1320, 1.442695
    %v1322 = vpow.pop %v1321
    %v1323 = vadd.f32 %v1322, 1.0
    %v1324 = vrcp.pop %v1323
    %v1325 = vmul.f32 1.0, %v1324
    %v1326 = vtanh.pop %v1319
    %v1327 = vmul.f32 %v1325, %v1168
    %1329 = vrot.lane.b32.xlu0 %v1326, 64
    %v1330 = vpop.permute.xlu0 %1329
    %v1332 = vmul.f32 %v1325, %v1330
    %1334 = vrot.lane.b32.xlu0 %v1332, 32
    %v1335 = vpop.permute.xlu0 %1334
    %v1337 = vadd.f32 %v1327, %v1335
    %v1338 = vtanh.pop %v1337
    %1340 = vrot.lane.b32.xlu0 %v1338, 64
    %v1341 = vpop.permute.xlu0 %1340
    %v1343 = vmul.f32 %v1325, %v1341
    %v1344 = vpack.c.bf16 %v1343, %v1343
    %1346 = vrot.lane.b32.xlu0 %v1344, 32
    %v1347 = vpop.permute.xlu0 %1346
    %v1349 = vsel %vm229, %v1347, 0
    %1351 = vmatprep.subr.bf16.mxu0 0
    %1352 = vmatpush1.bf16.msra.mxu0 %v225
    %1353 = vmatprep.subr.bf16.mxu0 0
    %1354 = vmatpush1.bf16.msra.mxu0 %v226
    %1355 = vmatprep.subr.bf16.mxu0 0
    %1356 = vmatpush1.bf16.msra.mxu0 0
    %1357 = vmatprep.subr.bf16.mxu0 0
    %1358 = vmatpush1.bf16.msra.mxu0 0
    %1359 = vmatprep.subr.bf16.mxu0 0
    %1360 = vmatpush1.bf16.msra.mxu0 0
    %1361 = vmatprep.subr.bf16.mxu0 0
    %1362 = vmatpush1.bf16.msra.mxu0 0
    %1363 = vmatprep.subr.bf16.mxu0 0
    %1364 = vmatpush1.bf16.msra.mxu0 0
    %1365 = vmatprep.subr.bf16.mxu0 0
    %1366 = vmatpush1.bf16.msra.mxu0 0
    %1367 = vmatprep.subr.bf16.mxu0 0
    %1368 = vmatpush1.bf16.msra.mxu0 0
    %1369 = vmatprep.subr.bf16.mxu0 0
    %1370 = vmatpush1.bf16.msra.mxu0 0
    %1371 = vmatprep.subr.bf16.mxu0 0
    %1372 = vmatpush1.bf16.msra.mxu0 0
    %1373 = vmatprep.subr.bf16.mxu0 0
    %1374 = vmatpush1.bf16.msra.mxu0 0
    %1375 = vmatprep.subr.bf16.mxu0 0
    %1376 = vmatpush1.bf16.msra.mxu0 0
    %1377 = vmatprep.subr.bf16.mxu0 0
    %1378 = vmatpush1.bf16.msra.mxu0 0
    %1379 = vmatprep.subr.bf16.mxu0 0
    %1380 = vmatpush1.bf16.msra.mxu0 0
    %1381 = vmatprep.subr.bf16.mxu0 0
    %1382 = vmatpush1.bf16.msra.mxu0 0
    %1383 = vmatprep.mubr.bf16.mxu0 0
    %1384 = vmatmul.mubr.bf16.gmra.mrb[0].mxu0 %v1349
    %v1385 = vpop.f32.mrb[0].mxu0
    %v1386 = vadd.f32 0.0, %v1385
    %v1387 = vpop.f32.mrb[0].mxu0
    %v1388 = vpop.f32.mrb[0].mxu0
    %v1389 = vpop.f32.mrb[0].mxu0
    %1390 = vdwg.mxu0
    %v1392 = vrot.slane %v1386, 2
    %v1394 = vadd.f32 %v196, %v1392
    %v1395 = vrot.slane %v1344, 1
    %1396 = vrot.lane.b32.xlu0 %v1395, 32
    %v1397 = vpop.permute.xlu0 %1396
    %v1399 = vsel %vm229, %v1397, 0
    %1401 = vmatprep.subr.bf16.mxu0 0
    %1402 = vmatpush1.bf16.msra.mxu0 %v362
    %1403 = vmatprep.subr.bf16.mxu0 0
    %1404 = vmatpush1.bf16.msra.mxu0 %v363
    %1405 = vmatprep.subr.bf16.mxu0 0
    %1406 = vmatpush1.bf16.msra.mxu0 0
    %1407 = vmatprep.subr.bf16.mxu0 0
    %1408 = vmatpush1.bf16.msra.mxu0 0
    %1409 = vmatprep.subr.bf16.mxu0 0
    %1410 = vmatpush1.bf16.msra.mxu0 0
    %1411 = vmatprep.subr.bf16.mxu0 0
    %1412 = vmatpush1.bf16.msra.mxu0 0
    %1413 = vmatprep.subr.bf16.mxu0 0
    %1414 = vmatpush1.bf16.msra.mxu0 0
    %1415 = vmatprep.subr.bf16.mxu0 0
    %1416 = vmatpush1.bf16.msra.mxu0 0
    %1417 = vmatprep.subr.bf16.mxu0 0
    %1418 = vmatpush1.bf16.msra.mxu0 0
    %1419 = vmatprep.subr.bf16.mxu0 0
    %1420 = vmatpush1.bf16.msra.mxu0 0
    %1421 = vmatprep.subr.bf16.mxu0 0
    %1422 = vmatpush1.bf16.msra.mxu0 0
    %1423 = vmatprep.subr.bf16.mxu0 0
    %1424 = vmatpush1.bf16.msra.mxu0 0
    %1425 = vmatprep.subr.bf16.mxu0 0
    %1426 = vmatpush1.bf16.msra.mxu0 0
    %1427 = vmatprep.subr.bf16.mxu0 0
    %1428 = vmatpush1.bf16.msra.mxu0 0
    %1429 = vmatprep.subr.bf16.mxu0 0
    %1430 = vmatpush1.bf16.msra.mxu0 0
    %1431 = vmatprep.subr.bf16.mxu0 0
    %1432 = vmatpush1.bf16.msra.mxu0 0
    %1433 = vmatprep.mubr.bf16.mxu0 0
    %1434 = vmatmul.mubr.bf16.gmra.mrb[0].mxu0 %v1399
    %v1435 = vpop.f32.mrb[0].mxu0
    %v1436 = vadd.f32 0.0, %v1435
    %v1437 = vpop.f32.mrb[0].mxu0
    %v1438 = vpop.f32.mrb[0].mxu0
    %v1439 = vpop.f32.mrb[0].mxu0
    %1440 = vdwg.mxu0
    %1441 = vmatprep.subr.bf16.mxu0 0
    %1442 = vmatpush1.bf16.msra.mxu0 %v417
    %1443 = vmatprep.subr.bf16.mxu0 0
    %1444 = vmatpush1.bf16.msra.mxu0 %v418
    %1445 = vmatprep.subr.bf16.mxu0 0
    %1446 = vmatpush1.bf16.msra.mxu0 0
    %1447 = vmatprep.subr.bf16.mxu0 0
    %1448 = vmatpush1.bf16.msra.mxu0 0
    %1449 = vmatprep.subr.bf16.mxu0 0
    %1450 = vmatpush1.bf16.msra.mxu0 0
    %1451 = vmatprep.subr.bf16.mxu0 0
    %1452 = vmatpush1.bf16.msra.mxu0 0
    %1453 = vmatprep.subr.bf16.mxu0 0
    %1454 = vmatpush1.bf16.msra.mxu0 0
    %1455 = vmatprep.subr.bf16.mxu0 0
    %1456 = vmatpush1.bf16.msra.mxu0 0
    %1457 = vmatprep.subr.bf16.mxu0 0
    %1458 = vmatpush1.bf16.msra.mxu0 0
    %1459 = vmatprep.subr.bf16.mxu0 0
    %1460 = vmatpush1.bf16.msra.mxu0 0
    %1461 = vmatprep.subr.bf16.mxu0 0
    %1462 = vmatpush1.bf16.msra.mxu0 0
    %1463 = vmatprep.subr.bf16.mxu0 0
    %1464 = vmatpush1.bf16.msra.mxu0 0
    %1465 = vmatprep.subr.bf16.mxu0 0
    %1466 = vmatpush1.bf16.msra.mxu0 0
    %1467 = vmatprep.subr.bf16.mxu0 0
    %1468 = vmatpush1.bf16.msra.mxu0 0
    %1469 = vmatprep.subr.bf16.mxu0 0
    %1470 = vmatpush1.bf16.msra.mxu0 0
    %1471 = vmatprep.subr.bf16.mxu0 0
    %1472 = vmatpush1.bf16.msra.mxu0 0
    %1473 = vmatprep.mubr.bf16.mxu0 0
    %1474 = vmatmul.mubr.bf16.gmra.mrb[0].mxu0 %v1349
    %v1475 = vpop.f32.mrb[0].mxu0
    %v1476 = vadd.f32 %v1436, %v1475
    %v1477 = vpop.f32.mrb[0].mxu0
    %v1478 = vpop.f32.mrb[0].mxu0
    %v1479 = vpop.f32.mrb[0].mxu0
    %1480 = vdwg.mxu0
    %v1481 = vadd.f32 %v1476, %v465
    %v1483 = vrot.slane %v1394, 6
    %v1486 = vrot.slane %v1481, 6
    %v1488 = vsel %vm178, %v1483, %v1486
    %v1489 = vxor.u32 %v1488, 2147483648
    %v1490 = vmul.f32 %v1489, 1.442695
    %v1491 = vpow.pop %v1490
    %v1492 = vadd.f32 %v1491, 1.0
    %v1493 = vrcp.pop %v1492
    %v1494 = vmul.f32 1.0, %v1493
    %v1495 = vtanh.pop %v1488
    %v1496 = vmul.f32 %v1494, %v1337
    %1498 = vrot.lane.b32.xlu0 %v1495, 64
    %v1499 = vpop.permute.xlu0 %1498
    %v1501 = vmul.f32 %v1494, %v1499
    %1503 = vrot.lane.b32.xlu0 %v1501, 32
    %v1504 = vpop.permute.xlu0 %1503
    %v1506 = vadd.f32 %v1496, %v1504
    %v1507 = vtanh.pop %v1506
    %1509 = vrot.lane.b32.xlu0 %v1507, 64
    %v1510 = vpop.permute.xlu0 %1509
    %v1512 = vmul.f32 %v1494, %v1510
    %v1513 = vpack.c.bf16 %v1512, %v1512
    %v1515 = vrot.slane %v1513, 1
    %1516 = vrot.lane.b32.xlu0 %v1515, 32
    %v1517 = vpop.permute.xlu0 %1516
    %v1519 = vsel %vm229, %v1517, 0
    %1521 = vmatprep.subr.bf16.mxu0 0
    %1522 = vmatpush1.bf16.msra.mxu0 %v362
    %1523 = vmatprep.subr.bf16.mxu0 0
    %1524 = vmatpush1.bf16.msra.mxu0 %v363
    %1525 = vmatprep.subr.bf16.mxu0 0
    %1526 = vmatpush1.bf16.msra.mxu0 0
    %1527 = vmatprep.subr.bf16.mxu0 0
    %1528 = vmatpush1.bf16.msra.mxu0 0
    %1529 = vmatprep.subr.bf16.mxu0 0
    %1530 = vmatpush1.bf16.msra.mxu0 0
    %1531 = vmatprep.subr.bf16.mxu0 0
    %1532 = vmatpush1.bf16.msra.mxu0 0
    %1533 = vmatprep.subr.bf16.mxu0 0
    %1534 = vmatpush1.bf16.msra.mxu0 0
    %1535 = vmatprep.subr.bf16.mxu0 0
    %1536 = vmatpush1.bf16.msra.mxu0 0
    %1537 = vmatprep.subr.bf16.mxu0 0
    %1538 = vmatpush1.bf16.msra.mxu0 0
    %1539 = vmatprep.subr.bf16.mxu0 0
    %1540 = vmatpush1.bf16.msra.mxu0 0
    %1541 = vmatprep.subr.bf16.mxu0 0
    %1542 = vmatpush1.bf16.msra.mxu0 0
    %1543 = vmatprep.subr.bf16.mxu0 0
    %1544 = vmatpush1.bf16.msra.mxu0 0
    %1545 = vmatprep.subr.bf16.mxu0 0
    %1546 = vmatpush1.bf16.msra.mxu0 0
    %1547 = vmatprep.subr.bf16.mxu0 0
    %1548 = vmatpush1.bf16.msra.mxu0 0
    %1549 = vmatprep.subr.bf16.mxu0 0
    %1550 = vmatpush1.bf16.msra.mxu0 0
    %1551 = vmatprep.subr.bf16.mxu0 0
    %1552 = vmatpush1.bf16.msra.mxu0 0
    %1553 = vmatprep.mubr.bf16.mxu0 0
    %1554 = vmatmul.mubr.bf16.gmra.mrb[0].mxu0 %v1519
    %v1555 = vpop.f32.mrb[0].mxu0
    %v1556 = vadd.f32 0.0, %v1555
    %v1557 = vpop.f32.mrb[0].mxu0
    %v1558 = vpop.f32.mrb[0].mxu0
    %v1559 = vpop.f32.mrb[0].mxu0
    %1560 = vdwg.mxu0
    %1561 = vrot.lane.b32.xlu0 %v1513, 32
    %v1562 = vpop.permute.xlu0 %1561
    %v1564 = vsel %vm229, %v1562, 0
    %1566 = vmatprep.subr.bf16.mxu0 0
    %1567 = vmatpush1.bf16.msra.mxu0 %v417
    %1568 = vmatprep.subr.bf16.mxu0 0
    %1569 = vmatpush1.bf16.msra.mxu0 %v418
    %1570 = vmatprep.subr.bf16.mxu0 0
    %1571 = vmatpush1.bf16.msra.mxu0 0
    %1572 = vmatprep.subr.bf16.mxu0 0
    %1573 = vmatpush1.bf16.msra.mxu0 0
    %1574 = vmatprep.subr.bf16.mxu0 0
    %1575 = vmatpush1.bf16.msra.mxu0 0
    %1576 = vmatprep.subr.bf16.mxu0 0
    %1577 = vmatpush1.bf16.msra.mxu0 0
    %1578 = vmatprep.subr.bf16.mxu0 0
    %1579 = vmatpush1.bf16.msra.mxu0 0
    %1580 = vmatprep.subr.bf16.mxu0 0
    %1581 = vmatpush1.bf16.msra.mxu0 0
    %1582 = vmatprep.subr.bf16.mxu0 0
    %1583 = vmatpush1.bf16.msra.mxu0 0
    %1584 = vmatprep.subr.bf16.mxu0 0
    %1585 = vmatpush1.bf16.msra.mxu0 0
    %1586 = vmatprep.subr.bf16.mxu0 0
    %1587 = vmatpush1.bf16.msra.mxu0 0
    %1588 = vmatprep.subr.bf16.mxu0 0
    %1589 = vmatpush1.bf16.msra.mxu0 0
    %1590 = vmatprep.subr.bf16.mxu0 0
    %1591 = vmatpush1.bf16.msra.mxu0 0
    %1592 = vmatprep.subr.bf16.mxu0 0
    %1593 = vmatpush1.bf16.msra.mxu0 0
    %1594 = vmatprep.subr.bf16.mxu0 0
    %1595 = vmatpush1.bf16.msra.mxu0 0
    %1596 = vmatprep.subr.bf16.mxu0 0
    %1597 = vmatpush1.bf16.msra.mxu0 0
    %1598 = vmatprep.mubr.bf16.mxu0 0
    %1599 = vmatmul.mubr.bf16.gmra.mrb[0].mxu0 %v1564
    %v1600 = vpop.f32.mrb[0].mxu0
    %v1601 = vadd.f32 %v1556, %v1600
    %v1602 = vpop.f32.mrb[0].mxu0
    %v1603 = vpop.f32.mrb[0].mxu0
    %v1604 = vpop.f32.mrb[0].mxu0
    %1605 = vdwg.mxu0
    %v1606 = vadd.f32 %v1601, %v465
    %v1607 = vxor.u32 %v1606, 2147483648
    %v1608 = vmul.f32 %v1607, 1.442695
    %v1609 = vpow.pop %v1608
    %v1610 = vadd.f32 %v1609, 1.0
    %v1611 = vrcp.pop %v1610
    %v1612 = vmul.f32 1.0, %v1611
    %v1613 = vtanh.pop %v1606
    %v1615 = vrot.slane %v1506, 2
    %v1617 = vmul.f32 %v1612, %v1615
    %1619 = vrot.lane.b32.xlu0 %v1613, 64
    %v1620 = vpop.permute.xlu0 %1619
    %v1622 = vmul.f32 %v1612, %v1620
    %1624 = vrot.lane.b32.xlu0 %v1622, 32
    %v1625 = vpop.permute.xlu0 %1624
    %v1627 = vadd.f32 %v1617, %v1625
    %v1628 = vtanh.pop %v1627
    %1630 = vrot.lane.b32.xlu0 %v1628, 64
    %v1631 = vpop.permute.xlu0 %1630
    %v1633 = vmul.f32 %v1612, %v1631
    %1635 = vrot.lane.b32.xlu0 %v1512, 32
    %v1636 = vpop.permute.xlu0 %1635
    %vm1638 = vcmask 254976
    %1639 = vst.msk [vmem:[#allocation11] sm:$0x3] %vm1638, %v1636
    %1640 = vrot.lane.b32.xlu0 %v1506, 96
    %v1641 = vpop.permute.xlu0 %1640
    %1643 = vst.msk [vmem:[#allocation12] sm:$0x3] %vm1638, %v1641
    %1645 = vrot.lane.b32.xlu0 %v1633, 32
    %v1646 = vpop.permute.xlu0 %1645
    %s1648 = scalar_lea.vmem [#allocation11], 2
    %1649 = vst.msk [vmem:[%s1648] sm:$0x3] %vm1638, %v1646
    %1651 = vrot.lane.b32.xlu0 %v1627, 96
    %v1652 = vpop.permute.xlu0 %1651
    %s1654 = scalar_lea.vmem [#allocation12], 2
    %1655 = vst.msk [vmem:[%s1654] sm:$0x3] %vm1638, %v1652
    %v1656 = vld [vmem:[%s8] sm:$0xff]
    %v1657 = vld [vmem:[%s8 + $0x8] sm:$0xff]
    %v1658 = vld [vmem:[%s8 + $0x10] sm:$0xff]
    %v1659 = vld [vmem:[%s8 + $0x18] sm:$0xff]
    %v1660 = vld [vmem:[#allocation4] sm:$0x1]
    %v1662 = vlaneseq
    %v1663 = vshrl.u32 %v1662, 7
    %v1664 = vsub.s32 0, %v1663
    %v1665 = vrot.slane %v1660, %v1664
    %v1667 = vsel %vm229, %v1646, 0
    %1669 = vmatprep.subr.mxu0 0.0
    %1670 = vmatpush1.msra.mxu0 %v1656
    %1671 = vmatprep.subr.mxu0 0.0
    %1672 = vmatpush1.msra.mxu0 %v1657
    %1673 = vmatprep.subr.mxu0 0.0
    %1674 = vmatpush1.msra.mxu0 %v1658
    %1675 = vmatprep.subr.mxu0 0.0
    %1676 = vmatpush1.msra.mxu0 %v1659
    %1677 = vmatprep.subr.mxu0 0.0
    %1678 = vmatpush1.msra.mxu0 0.0
    %1679 = vmatprep.subr.mxu0 0.0
    %1680 = vmatpush1.msra.mxu0 0.0
    %1681 = vmatprep.subr.mxu0 0.0
    %1682 = vmatpush1.msra.mxu0 0.0
    %1683 = vmatprep.subr.mxu0 0.0
    %1684 = vmatpush1.msra.mxu0 0.0
    %1685 = vmatprep.subr.mxu0 0.0
    %1686 = vmatpush1.msra.mxu0 0.0
    %1687 = vmatprep.subr.mxu0 0.0
    %1688 = vmatpush1.msra.mxu0 0.0
    %1689 = vmatprep.subr.mxu0 0.0
    %1690 = vmatpush1.msra.mxu0 0.0
    %1691 = vmatprep.subr.mxu0 0.0
    %1692 = vmatpush1.msra.mxu0 0.0
    %1693 = vmatprep.subr.mxu0 0.0
    %1694 = vmatpush1.msra.mxu0 0.0
    %1695 = vmatprep.subr.mxu0 0.0
    %1696 = vmatpush1.msra.mxu0 0.0
    %1697 = vmatprep.subr.mxu0 0.0
    %1698 = vmatpush1.msra.mxu0 0.0
    %1699 = vmatprep.subr.mxu0 0.0
    %1700 = vmatpush1.msra.mxu0 0.0
    %1701 = vmatprep.subr.mxu0 0.0
    %1702 = vmatpush1.msra.mxu0 0.0
    %1703 = vmatprep.subr.mxu0 0.0
    %1704 = vmatpush1.msra.mxu0 0.0
    %1705 = vmatprep.subr.mxu0 0.0
    %1706 = vmatpush1.msra.mxu0 0.0
    %1707 = vmatprep.subr.mxu0 0.0
    %1708 = vmatpush1.msra.mxu0 0.0
    %1709 = vmatprep.subr.mxu0 0.0
    %1710 = vmatpush1.msra.mxu0 0.0
    %1711 = vmatprep.subr.mxu0 0.0
    %1712 = vmatpush1.msra.mxu0 0.0
    %1713 = vmatprep.subr.mxu0 0.0
    %1714 = vmatpush1.msra.mxu0 0.0
    %1715 = vmatprep.subr.mxu0 0.0
    %1716 = vmatpush1.msra.mxu0 0.0
    %1717 = vmatprep.subr.mxu0 0.0
    %1718 = vmatpush1.msra.mxu0 0.0
    %1719 = vmatprep.subr.mxu0 0.0
    %1720 = vmatpush1.msra.mxu0 0.0
    %1721 = vmatprep.subr.mxu0 0.0
    %1722 = vmatpush1.msra.mxu0 0.0
    %1723 = vmatprep.subr.mxu0 0.0
    %1724 = vmatpush1.msra.mxu0 0.0
    %1725 = vmatprep.subr.mxu0 0.0
    %1726 = vmatpush1.msra.mxu0 0.0
    %1727 = vmatprep.subr.mxu0 0.0
    %1728 = vmatpush1.msra.mxu0 0.0
    %1729 = vmatprep.subr.mxu0 0.0
    %1730 = vmatpush1.msra.mxu0 0.0
    %1731 = vmatprep.subr.mxu0 0.0
    %1732 = vmatpush1.msra.mxu0 0.0
    %1733 = vmatprep.mubr.f32.mxu0 0.0
    %1734 = vmatmul.mubr.f32.gmra.mrb[0].mxu0 %v1667
    %v1735 = vpop.f32.mrb[0].mxu0
    %v1736 = vadd.f32 %v1665, %v1735
    %v1737 = vpop.f32.mrb[0].mxu0
    %1738 = vdwg.mxu0
    %v1739 = vxor.u32 %v1736, 2147483648
    %v1740 = vmul.f32 %v1739, 1.442695
    %v1741 = vpow.pop %v1740
    %v1742 = vadd.f32 %v1741, 1.0
    %v1743 = vrcp.pop %v1742
    %v1744 = vmul.f32 1.0, %v1743
    %vm1745 = vcmask 1024
    %1746 = vst.msk [vmem:[%s10] sm:$0x3] %vm1745, %v1744
    // Predicated region
    $region50: #{sentiment_net_forward.1} parent=1 // pred_check
      _
    $region51: #{sentiment_net_forward.1} parent=1 // pred_check_branch
      %1748 = sbr.rel (0) target = $region53
    $region52: #{sentiment_net_forward.1} parent=1 // pred_region
      _
    $region53: #{sentiment_net_forward.1} parent=1 // pred_fallthru
      _
    // Predicated region
    $region54: #{sentiment_net_forward.1} parent=1 // pred_check
      _
    $region55: #{sentiment_net_forward.1} parent=1 // pred_check_branch
      %1750 = sbr.rel (0) target = $region57
    $region56: #{sentiment_net_forward.1} parent=1 // pred_region
      %s1752 = ssub.s32 64, 64
      %1753 = vsyncadd [#allocation7], %s1752
      %s1754 = sshll.u32 [#allocation11], 4
      %s1755 = int_to_ptr.vmem [resolvable:$true] %s1754
      %1760 = dma.vmem_to_hbm [thread:$0]  %s1755, 64, %s11, [#allocation7], 32, 32, 2
    $region57: #{sentiment_net_forward.1} parent=1 // pred_fallthru
      _
    // Predicated region
    $region58: #{sentiment_net_forward.1} parent=1 // pred_check
      _
    $region59: #{sentiment_net_forward.1} parent=1 // pred_check_branch
      %1762 = sbr.rel (0) target = $region61
    $region60: #{sentiment_net_forward.1} parent=1 // pred_region
      %s1764 = ssub.s32 64, 64
      %1765 = vsyncadd [#allocation13], %s1764
      %s1766 = sshll.u32 [#allocation12], 4
      %s1767 = int_to_ptr.vmem [resolvable:$true] %s1766
      %1772 = dma.vmem_to_hbm [thread:$0]  %s1767, 64, %s12, [#allocation13], 32, 32, 2
    $region61: #{sentiment_net_forward.1} parent=1 // pred_fallthru
      _
    // Predicated region
    $region62: #{sentiment_net_forward.1} parent=1 // pred_check
      _
    $region63: #{sentiment_net_forward.1} parent=1 // pred_check_branch
      %1774 = sbr.rel (0) target = $region65
    $region64: #{sentiment_net_forward.1} parent=1 // pred_region
      _
    $region65: #{sentiment_net_forward.1} parent=1 // pred_fallthru
      _
    // Predicated region
    $region66: #{sentiment_net_forward.1} parent=1 // pred_check
      _
    $region67: #{sentiment_net_forward.1} parent=1 // pred_check_branch
      %1776 = sbr.rel (0) target = $region69
    $region68: #{sentiment_net_forward.1} parent=1 // pred_region
      %1777 = dma.done [#allocation7], 64
    $region69: #{sentiment_net_forward.1} parent=1 // pred_fallthru
      _
    // Predicated region
    $region70: #{sentiment_net_forward.1} parent=1 // pred_check
      _
    $region71: #{sentiment_net_forward.1} parent=1 // pred_check_branch
      %1779 = sbr.rel (0) target = $region73
    $region72: #{sentiment_net_forward.1} parent=1 // pred_region
      %1780 = dma.done [#allocation13], 64
    $region73: #{sentiment_net_forward.1} parent=1 // pred_fallthru
      _
    %1781 = vsyncpa [#allocation6], 1
    %1782 = vsyncpa [#allocation9], 1
    %1783 = vsyncpa [#allocation7], 1
    %1784 = vsyncpa [#allocation13], 1

</llo_original>
